<compile_context>
chip_gen: v6e
topology: v6e:2x2x1
jax: 0.10.0
libtpu: 0.0.40
codegen_flags: <defaults>
</compile_context>

<pallas_src>
import jax
import jax.numpy as jnp
from jax.experimental import pallas as pl
from jax.experimental.pallas import tpu as pltpu


# ----------------------------------------------------------------------------
# Fused attention-gate kernel
# ----------------------------------------------------------------------------
def _attention_gate_kernel(x_ref, g_ref, wx_ref, bx_ref, wg_ref, bg_ref,
                           wpsi_ref, bpsi_ref, o_ref):
    """Per-batch fused attention gate.

    x_ref : (1, 4, HWg, Cin)   sub-pixel-major skip activation
    g_ref : (1, HWg, Cg)       gating activation (half resolution, flattened)
    wx_ref: (Cin, Cm)          1x1 conv W_x
    wg_ref: (4, Cg, Cm)        2x2 ConvTranspose taps, k = dy*2 + dx
    wpsi_ref: (1, Cm), bpsi_ref: (1, 1)   psi 1x1 conv (Cout=1) as a row
    o_ref : (1, 4, HWg, Cin)   gated output, same sub-pixel layout as x_ref
    """
    g = g_ref[0]                                             # (HWg, Cg)
    for k in range(4):                                       # 4 sub-pixel phases
        x_k = x_ref[0, k]                                    # (HWg, Cin)
        wx = jnp.dot(x_k, wx_ref[...],
                     preferred_element_type=jnp.float32) + bx_ref[...]
        wg = jnp.dot(g, wg_ref[k],
                     preferred_element_type=jnp.float32) + bg_ref[...]
        m = jnp.maximum(wx + wg, 0.0)                        # ReLU(w_x + w_g)
        # psi: 1x1 conv to a single channel as a lane reduction (avoids an
        # MXU matmul with N=1 and a sub-128-lane store).
        logit = jnp.sum(m * wpsi_ref[...], axis=-1, keepdims=True) + bpsi_ref[...]
        a = 1.0 / (1.0 + jnp.exp(-logit))                    # sigmoid, (HWg, 1)
        o_ref[0, k] = (a * x_k).astype(o_ref.dtype)          # gate * x


def _attention_gate_call(x_sp, g_fl, p):
    N, _, HWg, Cin = x_sp.shape
    Cg = g_fl.shape[-1]
    Cm = p["wx"].shape[-1]

    return pl.pallas_call(
        _attention_gate_kernel,
        out_shape=jax.ShapeDtypeStruct((N, 4, HWg, Cin), jnp.float32),
        grid=(N,),
        in_specs=[
            pl.BlockSpec((1, 4, HWg, Cin), lambda n: (n, 0, 0, 0)),
            pl.BlockSpec((1, HWg, Cg),     lambda n: (n, 0, 0)),
            pl.BlockSpec((Cin, Cm),        lambda n: (0, 0)),
            pl.BlockSpec((1, Cm),          lambda n: (0, 0)),
            pl.BlockSpec((4, Cg, Cm),      lambda n: (0, 0, 0)),
            pl.BlockSpec((1, Cm),          lambda n: (0, 0)),
            pl.BlockSpec((1, Cm),          lambda n: (0, 0)),
            pl.BlockSpec((1, 1),           lambda n: (0, 0)),
        ],
        out_specs=pl.BlockSpec((1, 4, HWg, Cin), lambda n: (n, 0, 0, 0)),
        compiler_params=pltpu.CompilerParams(
            dimension_semantics=("parallel",),   # N>=2 -> both v7x TCs busy
        ),
    )(x_sp, g_fl, p["wx"], p["bx"], p["wg"], p["bg"], p["wpsi"], p["bpsi"])


# ----------------------------------------------------------------------------
# Public forward (NCHW in / NCHW out, matching the PyTorch module)
# ----------------------------------------------------------------------------
def attention_block_forward(params, x_nchw, g_nchw):
    N, Cin, H, W = x_nchw.shape
    Ng, Cg, Hg, Wg = g_nchw.shape
    assert N == Ng and H == 2 * Hg and W == 2 * Wg

    x = jnp.transpose(x_nchw, (0, 2, 3, 1))                  # NHWC
    g = jnp.transpose(g_nchw, (0, 2, 3, 1))

    # Sub-pixel-major split of x: [n, k=dy*2+dx, h*Wg+w, c] = x[n, 2h+dy, 2w+dx, c]
    x_sp = (x.reshape(N, Hg, 2, Wg, 2, Cin)
              .transpose(0, 2, 4, 1, 3, 5)
              .reshape(N, 4, Hg * Wg, Cin))
    g_fl = g.reshape(N, Hg * Wg, Cg)

    out_sp = _attention_gate_call(x_sp, g_fl, params)        # (N, 4, HWg, Cin)

    # Inverse sub-pixel interleave back to full resolution.
    out = (out_sp.reshape(N, 2, 2, Hg, Wg, Cin)
                 .transpose(0, 3, 1, 4, 2, 5)
                 .reshape(N, H, W, Cin))
    return jnp.transpose(out, (0, 3, 1, 2))                  # NHWC -> NCHW


# ----------------------------------------------------------------------------
# Deterministic synthetic parameters
# ----------------------------------------------------------------------------
# NOTE: weights are stored directly in matmul layout:
#   wx   : (f_in, f_media)      <-> Conv2d(f_in, f_media, 1).weight[co, ci, 0, 0].T
#   wg   : (4, f_g, f_media)    <-> ConvTranspose2d(f_g, f_media, 2, 2).weight[ci, co, dy, dx],
#                                   tap index k = dy*2 + dx
#   wpsi : (1, f_media)         <-> Conv2d(f_media, 1, 1).weight[0, :, 0, 0]
# Loading real PyTorch weights only needs these transposes/reorderings.
def init_params(key, f_in, f_g, f_media):
    k1, k2, k3, k4, k5, k6 = jax.random.split(key, 6)
    return {
        "wx":   jax.random.normal(k1, (f_in, f_media), jnp.float32) * f_in ** -0.5,
        "bx":   jax.random.normal(k2, (1, f_media), jnp.float32) * 0.01,
        "wg":   jax.random.normal(k3, (4, f_g, f_media), jnp.float32) * (4 * f_g) ** -0.5,
        "bg":   jax.random.normal(k4, (1, f_media), jnp.float32) * 0.01,
        "wpsi": jax.random.normal(k5, (1, f_media), jnp.float32) * f_media ** -0.5,
        "bpsi": jax.random.normal(k6, (1, 1), jnp.float32) * 0.01,
    }


# ----------------------------------------------------------------------------
# Pure-JAX reference (for in-script sanity checking)
# ----------------------------------------------------------------------------
def _reference_forward(params, x_nchw, g_nchw):
    hi = jax.lax.Precision.HIGHEST
    N, Cin, H, W = x_nchw.shape
    _, Cg, Hg, Wg = g_nchw.shape
    x = jnp.transpose(x_nchw, (0, 2, 3, 1))
    g = jnp.transpose(g_nchw, (0, 2, 3, 1))
    wx = jnp.einsum("nhwc,cm->nhwm", x, params["wx"], precision=hi) + params["bx"][0]
    wg4 = jnp.einsum("nhwc,kcm->nkhwm", g, params["wg"], precision=hi) + params["bg"][0]
    wg_full = (wg4.reshape(N, 2, 2, Hg, Wg, -1)
                  .transpose(0, 3, 1, 4, 2, 5)
                  .reshape(N, H, W, -1))
    m = jnp.maximum(wx + wg_full, 0.0)
    logit = jnp.einsum("nhwm,m->nhw", m, params["wpsi"][0], precision=hi) + params["bpsi"][0, 0]
    a = 1.0 / (1.0 + jnp.exp(-logit))
    out = a[..., None] * x
    return jnp.transpose(out, (0, 3, 1, 2))


# ----------------------------------------------------------------------------
if __name__ == "__main__":
    key = jax.random.PRNGKey(0)
    k_params, k_x, k_g = jax.random.split(key, 3)

    # Small shapes implied by the module: skip connection x at full res,
    # gating signal g at half res with more channels.
    N, f_in, f_g, f_media, H, W = 2, 32, 64, 16, 16, 16
    params = init_params(k_params, f_in, f_g, f_media)
    x = jax.random.normal(k_x, (N, f_in, H, W), jnp.float32)       # NCHW
    g = jax.random.normal(k_g, (N, f_g, H // 2, W // 2), jnp.float32)

    fwd = jax.jit(attention_block_forward)
    out = jax.block_until_ready(fwd(params, x, g))

    assert out.shape == (N, f_in, H, W), out.shape
    assert bool(jnp.all(jnp.isfinite(out)))

    ref = _reference_forward(params, x, g)
    err = float(jnp.max(jnp.abs(out - ref)))
    assert err < 2e-3, f"max abs error vs reference: {err}"

    print("KERNEL_OK")
</pallas_src>

<mosaic_0001>
module attributes {stable_mosaic.version = 11 : i64} {
  func.func @_attention_gate_kernel(%arg0: i32, %arg1: memref<1x4x64x32xf32, #tpu.memory_space<vmem>>, %arg2: memref<1x64x64xf32, #tpu.memory_space<vmem>>, %arg3: memref<32x16xf32, #tpu.memory_space<vmem>>, %arg4: memref<1x16xf32, #tpu.memory_space<vmem>>, %arg5: memref<4x64x16xf32, #tpu.memory_space<vmem>>, %arg6: memref<1x16xf32, #tpu.memory_space<vmem>>, %arg7: memref<1x16xf32, #tpu.memory_space<vmem>>, %arg8: memref<1x1xf32, #tpu.memory_space<vmem>>, %arg9: memref<1x4x64x32xf32, #tpu.memory_space<vmem>>) attributes {dimension_semantics = [#tpu.dimension_semantics<parallel>], iteration_bounds = array<i64: 2>, scalar_prefetch = 0 : i64, scratch_operands = 0 : i64, tpu.core_type = #tpu.core_type<tc>, window_params = [{transform_indices = @transform_0, window_bounds = array<i64: 1, 4, 64, 32>}, {transform_indices = @transform_1, window_bounds = array<i64: 1, 64, 64>}, {pipeline_mode = #tpu.pipeline_mode<synchronous>, transform_indices = @transform_2, window_bounds = array<i64: 32, 16>}, {pipeline_mode = #tpu.pipeline_mode<synchronous>, transform_indices = @transform_3, window_bounds = array<i64: 1, 16>}, {pipeline_mode = #tpu.pipeline_mode<synchronous>, transform_indices = @transform_4, window_bounds = array<i64: 4, 64, 16>}, {pipeline_mode = #tpu.pipeline_mode<synchronous>, transform_indices = @transform_5, window_bounds = array<i64: 1, 16>}, {pipeline_mode = #tpu.pipeline_mode<synchronous>, transform_indices = @transform_6, window_bounds = array<i64: 1, 16>}, {pipeline_mode = #tpu.pipeline_mode<synchronous>, transform_indices = @transform_7, window_bounds = array<i64: 1, 1>}, {transform_indices = @transform_8, window_bounds = array<i64: 1, 4, 64, 32>}]} {
    %c0 = arith.constant 0 : index
    %c0_0 = arith.constant 0 : index
    %c0_1 = arith.constant 0 : index
    %0 = vector.load %arg2[%c0, %c0_0, %c0_1] : memref<1x64x64xf32, #tpu.memory_space<vmem>>, vector<1x64x64xf32>
    %1 = vector.shape_cast %0 : vector<1x64x64xf32> to vector<64x64xf32>
    %c0_2 = arith.constant 0 : index
    %c0_3 = arith.constant 0 : index
    %c0_4 = arith.constant 0 : index
    %c0_5 = arith.constant 0 : index
    %2 = vector.load %arg1[%c0_2, %c0_3, %c0_4, %c0_5] : memref<1x4x64x32xf32, #tpu.memory_space<vmem>>, vector<1x1x64x32xf32>
    %3 = vector.shape_cast %2 : vector<1x1x64x32xf32> to vector<64x32xf32>
    %c0_6 = arith.constant 0 : index
    %c0_7 = arith.constant 0 : index
    %4 = vector.load %arg3[%c0_6, %c0_7] : memref<32x16xf32, #tpu.memory_space<vmem>>, vector<32x16xf32>
    %cst = arith.constant dense<0.000000e+00> : vector<64x16xf32>
    %5 = tpu.matmul %3, %4, %cst {dimension_numbers = #tpu.dot_dimension_numbers<[1], [0], [0], [1], [0, 0, 1, 1], [], []>} : vector<64x32xf32>, vector<32x16xf32>, vector<64x16xf32> -> vector<64x16xf32>
    %c0_8 = arith.constant 0 : index
    %c0_9 = arith.constant 0 : index
    %6 = vector.load %arg4[%c0_8, %c0_9] : memref<1x16xf32, #tpu.memory_space<vmem>>, vector<1x16xf32>
    %7 = vector.broadcast %6 : vector<1x16xf32> to vector<64x16xf32>
    %8 = arith.addf %5, %7 : vector<64x16xf32>
    %c0_10 = arith.constant 0 : index
    %c0_11 = arith.constant 0 : index
    %c0_12 = arith.constant 0 : index
    %9 = vector.load %arg5[%c0_10, %c0_11, %c0_12] : memref<4x64x16xf32, #tpu.memory_space<vmem>>, vector<1x64x16xf32>
    %10 = vector.shape_cast %9 : vector<1x64x16xf32> to vector<64x16xf32>
    %cst_13 = arith.constant dense<0.000000e+00> : vector<64x16xf32>
    %11 = tpu.matmul %1, %10, %cst_13 {dimension_numbers = #tpu.dot_dimension_numbers<[1], [0], [0], [1], [0, 0, 1, 1], [], []>} : vector<64x64xf32>, vector<64x16xf32>, vector<64x16xf32> -> vector<64x16xf32>
    %c0_14 = arith.constant 0 : index
    %c0_15 = arith.constant 0 : index
    %12 = vector.load %arg6[%c0_14, %c0_15] : memref<1x16xf32, #tpu.memory_space<vmem>>, vector<1x16xf32>
    %13 = vector.broadcast %12 : vector<1x16xf32> to vector<64x16xf32>
    %14 = arith.addf %11, %13 : vector<64x16xf32>
    %15 = arith.addf %8, %14 : vector<64x16xf32>
    %cst_16 = arith.constant 0.000000e+00 : f32
    %16 = vector.broadcast %cst_16 : f32 to vector<64x16xf32>
    %17 = arith.maximumf %15, %16 : vector<64x16xf32>
    %c0_17 = arith.constant 0 : index
    %c0_18 = arith.constant 0 : index
    %18 = vector.load %arg7[%c0_17, %c0_18] : memref<1x16xf32, #tpu.memory_space<vmem>>, vector<1x16xf32>
    %19 = vector.broadcast %18 : vector<1x16xf32> to vector<64x16xf32>
    %20 = arith.mulf %17, %19 : vector<64x16xf32>
    %cst_19 = arith.constant dense<0.000000e+00> : vector<64xf32>
    %21 = vector.multi_reduction <add>, %20, %cst_19 [1] : vector<64x16xf32> to vector<64xf32>
    %22 = vector.shape_cast %21 : vector<64xf32> to vector<64x1xf32>
    %c0_20 = arith.constant 0 : index
    %c0_21 = arith.constant 0 : index
    %23 = vector.load %arg8[%c0_20, %c0_21] : memref<1x1xf32, #tpu.memory_space<vmem>>, vector<1x1xf32>
    %24 = vector.broadcast %23 : vector<1x1xf32> to vector<64x1xf32>
    %25 = arith.addf %22, %24 : vector<64x1xf32>
    %cst_22 = arith.constant 0.000000e+00 : f32
    %26 = vector.broadcast %cst_22 : f32 to vector<64x1xf32>
    %27 = arith.subf %26, %25 : vector<64x1xf32>
    %28 = math.exp %27 : vector<64x1xf32>
    %cst_23 = arith.constant 1.000000e+00 : f32
    %29 = vector.broadcast %cst_23 : f32 to vector<64x1xf32>
    %30 = arith.addf %29, %28 : vector<64x1xf32>
    %cst_24 = arith.constant 1.000000e+00 : f32
    %31 = vector.broadcast %cst_24 : f32 to vector<64x1xf32>
    %32 = arith.divf %31, %30 : vector<64x1xf32>
    %33 = vector.broadcast %32 : vector<64x1xf32> to vector<64x32xf32>
    %34 = arith.mulf %33, %3 : vector<64x32xf32>
    %c0_25 = arith.constant 0 : index
    %c0_26 = arith.constant 0 : index
    %c0_27 = arith.constant 0 : index
    %c0_28 = arith.constant 0 : index
    %35 = vector.load %arg9[%c0_25, %c0_26, %c0_27, %c0_28] : memref<1x4x64x32xf32, #tpu.memory_space<vmem>>, vector<1x1x64x32xf32>
    %36 = vector.shape_cast %35 : vector<1x1x64x32xf32> to vector<64x32xf32>
    %37 = vector.shape_cast %34 : vector<64x32xf32> to vector<1x1x64x32xf32>
    tpu.vector_store %arg9[%c0_25, %c0_26, %c0_27, %c0_28], %37 {strides = array<i32>} : memref<1x4x64x32xf32, #tpu.memory_space<vmem>>, vector<1x1x64x32xf32>,
    %c0_29 = arith.constant 0 : index
    %c1 = arith.constant 1 : index
    %c0_30 = arith.constant 0 : index
    %c0_31 = arith.constant 0 : index
    %38 = vector.load %arg1[%c0_29, %c1, %c0_30, %c0_31] : memref<1x4x64x32xf32, #tpu.memory_space<vmem>>, vector<1x1x64x32xf32>
    %39 = vector.shape_cast %38 : vector<1x1x64x32xf32> to vector<64x32xf32>
    %c0_32 = arith.constant 0 : index
    %c0_33 = arith.constant 0 : index
    %40 = vector.load %arg3[%c0_32, %c0_33] : memref<32x16xf32, #tpu.memory_space<vmem>>, vector<32x16xf32>
    %cst_34 = arith.constant dense<0.000000e+00> : vector<64x16xf32>
    %41 = tpu.matmul %39, %40, %cst_34 {dimension_numbers = #tpu.dot_dimension_numbers<[1], [0], [0], [1], [0, 0, 1, 1], [], []>} : vector<64x32xf32>, vector<32x16xf32>, vector<64x16xf32> -> vector<64x16xf32>
    %c0_35 = arith.constant 0 : index
    %c0_36 = arith.constant 0 : index
    %42 = vector.load %arg4[%c0_35, %c0_36] : memref<1x16xf32, #tpu.memory_space<vmem>>, vector<1x16xf32>
    %43 = vector.broadcast %42 : vector<1x16xf32> to vector<64x16xf32>
    %44 = arith.addf %41, %43 : vector<64x16xf32>
    %c1_37 = arith.constant 1 : index
    %c0_38 = arith.constant 0 : index
    %c0_39 = arith.constant 0 : index
    %45 = vector.load %arg5[%c1_37, %c0_38, %c0_39] : memref<4x64x16xf32, #tpu.memory_space<vmem>>, vector<1x64x16xf32>
    %46 = vector.shape_cast %45 : vector<1x64x16xf32> to vector<64x16xf32>
    %cst_40 = arith.constant dense<0.000000e+00> : vector<64x16xf32>
    %47 = tpu.matmul %1, %46, %cst_40 {dimension_numbers = #tpu.dot_dimension_numbers<[1], [0], [0], [1], [0, 0, 1, 1], [], []>} : vector<64x64xf32>, vector<64x16xf32>, vector<64x16xf32> -> vector<64x16xf32>
    %c0_41 = arith.constant 0 : index
    %c0_42 = arith.constant 0 : index
    %48 = vector.load %arg6[%c0_41, %c0_42] : memref<1x16xf32, #tpu.memory_space<vmem>>, vector<1x16xf32>
    %49 = vector.broadcast %48 : vector<1x16xf32> to vector<64x16xf32>
    %50 = arith.addf %47, %49 : vector<64x16xf32>
    %51 = arith.addf %44, %50 : vector<64x16xf32>
    %cst_43 = arith.constant 0.000000e+00 : f32
    %52 = vector.broadcast %cst_43 : f32 to vector<64x16xf32>
    %53 = arith.maximumf %51, %52 : vector<64x16xf32>
    %c0_44 = arith.constant 0 : index
    %c0_45 = arith.constant 0 : index
    %54 = vector.load %arg7[%c0_44, %c0_45] : memref<1x16xf32, #tpu.memory_space<vmem>>, vector<1x16xf32>
    %55 = vector.broadcast %54 : vector<1x16xf32> to vector<64x16xf32>
    %56 = arith.mulf %53, %55 : vector<64x16xf32>
    %cst_46 = arith.constant dense<0.000000e+00> : vector<64xf32>
    %57 = vector.multi_reduction <add>, %56, %cst_46 [1] : vector<64x16xf32> to vector<64xf32>
    %58 = vector.shape_cast %57 : vector<64xf32> to vector<64x1xf32>
    %c0_47 = arith.constant 0 : index
    %c0_48 = arith.constant 0 : index
    %59 = vector.load %arg8[%c0_47, %c0_48] : memref<1x1xf32, #tpu.memory_space<vmem>>, vector<1x1xf32>
    %60 = vector.broadcast %59 : vector<1x1xf32> to vector<64x1xf32>
    %61 = arith.addf %58, %60 : vector<64x1xf32>
    %cst_49 = arith.constant 0.000000e+00 : f32
    %62 = vector.broadcast %cst_49 : f32 to vector<64x1xf32>
    %63 = arith.subf %62, %61 : vector<64x1xf32>
    %64 = math.exp %63 : vector<64x1xf32>
    %cst_50 = arith.constant 1.000000e+00 : f32
    %65 = vector.broadcast %cst_50 : f32 to vector<64x1xf32>
    %66 = arith.addf %65, %64 : vector<64x1xf32>
    %cst_51 = arith.constant 1.000000e+00 : f32
    %67 = vector.broadcast %cst_51 : f32 to vector<64x1xf32>
    %68 = arith.divf %67, %66 : vector<64x1xf32>
    %69 = vector.broadcast %68 : vector<64x1xf32> to vector<64x32xf32>
    %70 = arith.mulf %69, %39 : vector<64x32xf32>
    %c0_52 = arith.constant 0 : index
    %c1_53 = arith.constant 1 : index
    %c0_54 = arith.constant 0 : index
    %c0_55 = arith.constant 0 : index
    %71 = vector.load %arg9[%c0_52, %c1_53, %c0_54, %c0_55] : memref<1x4x64x32xf32, #tpu.memory_space<vmem>>, vector<1x1x64x32xf32>
    %72 = vector.shape_cast %71 : vector<1x1x64x32xf32> to vector<64x32xf32>
    %73 = vector.shape_cast %70 : vector<64x32xf32> to vector<1x1x64x32xf32>
    tpu.vector_store %arg9[%c0_52, %c1_53, %c0_54, %c0_55], %73 {strides = array<i32>} : memref<1x4x64x32xf32, #tpu.memory_space<vmem>>, vector<1x1x64x32xf32>,
    %c0_56 = arith.constant 0 : index
    %c2 = arith.constant 2 : index
    %c0_57 = arith.constant 0 : index
    %c0_58 = arith.constant 0 : index
    %74 = vector.load %arg1[%c0_56, %c2, %c0_57, %c0_58] : memref<1x4x64x32xf32, #tpu.memory_space<vmem>>, vector<1x1x64x32xf32>
    %75 = vector.shape_cast %74 : vector<1x1x64x32xf32> to vector<64x32xf32>
    %c0_59 = arith.constant 0 : index
    %c0_60 = arith.constant 0 : index
    %76 = vector.load %arg3[%c0_59, %c0_60] : memref<32x16xf32, #tpu.memory_space<vmem>>, vector<32x16xf32>
    %cst_61 = arith.constant dense<0.000000e+00> : vector<64x16xf32>
    %77 = tpu.matmul %75, %76, %cst_61 {dimension_numbers = #tpu.dot_dimension_numbers<[1], [0], [0], [1], [0, 0, 1, 1], [], []>} : vector<64x32xf32>, vector<32x16xf32>, vector<64x16xf32> -> vector<64x16xf32>
    %c0_62 = arith.constant 0 : index
    %c0_63 = arith.constant 0 : index
    %78 = vector.load %arg4[%c0_62, %c0_63] : memref<1x16xf32, #tpu.memory_space<vmem>>, vector<1x16xf32>
    %79 = vector.broadcast %78 : vector<1x16xf32> to vector<64x16xf32>
    %80 = arith.addf %77, %79 : vector<64x16xf32>
    %c2_64 = arith.constant 2 : index
    %c0_65 = arith.constant 0 : index
    %c0_66 = arith.constant 0 : index
    %81 = vector.load %arg5[%c2_64, %c0_65, %c0_66] : memref<4x64x16xf32, #tpu.memory_space<vmem>>, vector<1x64x16xf32>
    %82 = vector.shape_cast %81 : vector<1x64x16xf32> to vector<64x16xf32>
    %cst_67 = arith.constant dense<0.000000e+00> : vector<64x16xf32>
    %83 = tpu.matmul %1, %82, %cst_67 {dimension_numbers = #tpu.dot_dimension_numbers<[1], [0], [0], [1], [0, 0, 1, 1], [], []>} : vector<64x64xf32>, vector<64x16xf32>, vector<64x16xf32> -> vector<64x16xf32>
    %c0_68 = arith.constant 0 : index
    %c0_69 = arith.constant 0 : index
    %84 = vector.load %arg6[%c0_68, %c0_69] : memref<1x16xf32, #tpu.memory_space<vmem>>, vector<1x16xf32>
    %85 = vector.broadcast %84 : vector<1x16xf32> to vector<64x16xf32>
    %86 = arith.addf %83, %85 : vector<64x16xf32>
    %87 = arith.addf %80, %86 : vector<64x16xf32>
    %cst_70 = arith.constant 0.000000e+00 : f32
    %88 = vector.broadcast %cst_70 : f32 to vector<64x16xf32>
    %89 = arith.maximumf %87, %88 : vector<64x16xf32>
    %c0_71 = arith.constant 0 : index
    %c0_72 = arith.constant 0 : index
    %90 = vector.load %arg7[%c0_71, %c0_72] : memref<1x16xf32, #tpu.memory_space<vmem>>, vector<1x16xf32>
    %91 = vector.broadcast %90 : vector<1x16xf32> to vector<64x16xf32>
    %92 = arith.mulf %89, %91 : vector<64x16xf32>
    %cst_73 = arith.constant dense<0.000000e+00> : vector<64xf32>
    %93 = vector.multi_reduction <add>, %92, %cst_73 [1] : vector<64x16xf32> to vector<64xf32>
    %94 = vector.shape_cast %93 : vector<64xf32> to vector<64x1xf32>
    %c0_74 = arith.constant 0 : index
    %c0_75 = arith.constant 0 : index
    %95 = vector.load %arg8[%c0_74, %c0_75] : memref<1x1xf32, #tpu.memory_space<vmem>>, vector<1x1xf32>
    %96 = vector.broadcast %95 : vector<1x1xf32> to vector<64x1xf32>
    %97 = arith.addf %94, %96 : vector<64x1xf32>
    %cst_76 = arith.constant 0.000000e+00 : f32
    %98 = vector.broadcast %cst_76 : f32 to vector<64x1xf32>
    %99 = arith.subf %98, %97 : vector<64x1xf32>
    %100 = math.exp %99 : vector<64x1xf32>
    %cst_77 = arith.constant 1.000000e+00 : f32
    %101 = vector.broadcast %cst_77 : f32 to vector<64x1xf32>
    %102 = arith.addf %101, %100 : vector<64x1xf32>
    %cst_78 = arith.constant 1.000000e+00 : f32
    %103 = vector.broadcast %cst_78 : f32 to vector<64x1xf32>
    %104 = arith.divf %103, %102 : vector<64x1xf32>
    %105 = vector.broadcast %104 : vector<64x1xf32> to vector<64x32xf32>
    %106 = arith.mulf %105, %75 : vector<64x32xf32>
    %c0_79 = arith.constant 0 : index
    %c2_80 = arith.constant 2 : index
    %c0_81 = arith.constant 0 : index
    %c0_82 = arith.constant 0 : index
    %107 = vector.load %arg9[%c0_79, %c2_80, %c0_81, %c0_82] : memref<1x4x64x32xf32, #tpu.memory_space<vmem>>, vector<1x1x64x32xf32>
    %108 = vector.shape_cast %107 : vector<1x1x64x32xf32> to vector<64x32xf32>
    %109 = vector.shape_cast %106 : vector<64x32xf32> to vector<1x1x64x32xf32>
    tpu.vector_store %arg9[%c0_79, %c2_80, %c0_81, %c0_82], %109 {strides = array<i32>} : memref<1x4x64x32xf32, #tpu.memory_space<vmem>>, vector<1x1x64x32xf32>,
    %c0_83 = arith.constant 0 : index
    %c3 = arith.constant 3 : index
    %c0_84 = arith.constant 0 : index
    %c0_85 = arith.constant 0 : index
    %110 = vector.load %arg1[%c0_83, %c3, %c0_84, %c0_85] : memref<1x4x64x32xf32, #tpu.memory_space<vmem>>, vector<1x1x64x32xf32>
    %111 = vector.shape_cast %110 : vector<1x1x64x32xf32> to vector<64x32xf32>
    %c0_86 = arith.constant 0 : index
    %c0_87 = arith.constant 0 : index
    %112 = vector.load %arg3[%c0_86, %c0_87] : memref<32x16xf32, #tpu.memory_space<vmem>>, vector<32x16xf32>
    %cst_88 = arith.constant dense<0.000000e+00> : vector<64x16xf32>
    %113 = tpu.matmul %111, %112, %cst_88 {dimension_numbers = #tpu.dot_dimension_numbers<[1], [0], [0], [1], [0, 0, 1, 1], [], []>} : vector<64x32xf32>, vector<32x16xf32>, vector<64x16xf32> -> vector<64x16xf32>
    %c0_89 = arith.constant 0 : index
    %c0_90 = arith.constant 0 : index
    %114 = vector.load %arg4[%c0_89, %c0_90] : memref<1x16xf32, #tpu.memory_space<vmem>>, vector<1x16xf32>
    %115 = vector.broadcast %114 : vector<1x16xf32> to vector<64x16xf32>
    %116 = arith.addf %113, %115 : vector<64x16xf32>
    %c3_91 = arith.constant 3 : index
    %c0_92 = arith.constant 0 : index
    %c0_93 = arith.constant 0 : index
    %117 = vector.load %arg5[%c3_91, %c0_92, %c0_93] : memref<4x64x16xf32, #tpu.memory_space<vmem>>, vector<1x64x16xf32>
    %118 = vector.shape_cast %117 : vector<1x64x16xf32> to vector<64x16xf32>
    %cst_94 = arith.constant dense<0.000000e+00> : vector<64x16xf32>
    %119 = tpu.matmul %1, %118, %cst_94 {dimension_numbers = #tpu.dot_dimension_numbers<[1], [0], [0], [1], [0, 0, 1, 1], [], []>} : vector<64x64xf32>, vector<64x16xf32>, vector<64x16xf32> -> vector<64x16xf32>
    %c0_95 = arith.constant 0 : index
    %c0_96 = arith.constant 0 : index
    %120 = vector.load %arg6[%c0_95, %c0_96] : memref<1x16xf32, #tpu.memory_space<vmem>>, vector<1x16xf32>
    %121 = vector.broadcast %120 : vector<1x16xf32> to vector<64x16xf32>
    %122 = arith.addf %119, %121 : vector<64x16xf32>
    %123 = arith.addf %116, %122 : vector<64x16xf32>
    %cst_97 = arith.constant 0.000000e+00 : f32
    %124 = vector.broadcast %cst_97 : f32 to vector<64x16xf32>
    %125 = arith.maximumf %123, %124 : vector<64x16xf32>
    %c0_98 = arith.constant 0 : index
    %c0_99 = arith.constant 0 : index
    %126 = vector.load %arg7[%c0_98, %c0_99] : memref<1x16xf32, #tpu.memory_space<vmem>>, vector<1x16xf32>
    %127 = vector.broadcast %126 : vector<1x16xf32> to vector<64x16xf32>
    %128 = arith.mulf %125, %127 : vector<64x16xf32>
    %cst_100 = arith.constant dense<0.000000e+00> : vector<64xf32>
    %129 = vector.multi_reduction <add>, %128, %cst_100 [1] : vector<64x16xf32> to vector<64xf32>
    %130 = vector.shape_cast %129 : vector<64xf32> to vector<64x1xf32>
    %c0_101 = arith.constant 0 : index
    %c0_102 = arith.constant 0 : index
    %131 = vector.load %arg8[%c0_101, %c0_102] : memref<1x1xf32, #tpu.memory_space<vmem>>, vector<1x1xf32>
    %132 = vector.broadcast %131 : vector<1x1xf32> to vector<64x1xf32>
    %133 = arith.addf %130, %132 : vector<64x1xf32>
    %cst_103 = arith.constant 0.000000e+00 : f32
    %134 = vector.broadcast %cst_103 : f32 to vector<64x1xf32>
    %135 = arith.subf %134, %133 : vector<64x1xf32>
    %136 = math.exp %135 : vector<64x1xf32>
    %cst_104 = arith.constant 1.000000e+00 : f32
    %137 = vector.broadcast %cst_104 : f32 to vector<64x1xf32>
    %138 = arith.addf %137, %136 : vector<64x1xf32>
    %cst_105 = arith.constant 1.000000e+00 : f32
    %139 = vector.broadcast %cst_105 : f32 to vector<64x1xf32>
    %140 = arith.divf %139, %138 : vector<64x1xf32>
    %141 = vector.broadcast %140 : vector<64x1xf32> to vector<64x32xf32>
    %142 = arith.mulf %141, %111 : vector<64x32xf32>
    %c0_106 = arith.constant 0 : index
    %c3_107 = arith.constant 3 : index
    %c0_108 = arith.constant 0 : index
    %c0_109 = arith.constant 0 : index
    %143 = vector.load %arg9[%c0_106, %c3_107, %c0_108, %c0_109] : memref<1x4x64x32xf32, #tpu.memory_space<vmem>>, vector<1x1x64x32xf32>
    %144 = vector.shape_cast %143 : vector<1x1x64x32xf32> to vector<64x32xf32>
    %145 = vector.shape_cast %142 : vector<64x32xf32> to vector<1x1x64x32xf32>
    tpu.vector_store %arg9[%c0_106, %c3_107, %c0_108, %c0_109], %145 {strides = array<i32>} : memref<1x4x64x32xf32, #tpu.memory_space<vmem>>, vector<1x1x64x32xf32>,
    return
  }
  func.func @transform_0(%arg0: i32) -> (i32, i32, i32, i32) {
    %c0_i32 = arith.constant 0 : i32
    %c0_i32_0 = arith.constant 0 : i32
    %c0_i32_1 = arith.constant 0 : i32
    %c0_i32_2 = arith.constant 0 : i32
    return %arg0, %c0_i32, %c0_i32_0, %c0_i32_1 : i32, i32, i32, i32
  }
  func.func @transform_1(%arg0: i32) -> (i32, i32, i32) {
    %c0_i32 = arith.constant 0 : i32
    %c0_i32_0 = arith.constant 0 : i32
    %c0_i32_1 = arith.constant 0 : i32
    return %arg0, %c0_i32, %c0_i32_0 : i32, i32, i32
  }
  func.func @transform_2(%arg0: i32) -> (i32, i32) {
    %c0_i32 = arith.constant 0 : i32
    %c0_i32_0 = arith.constant 0 : i32
    %c0_i32_1 = arith.constant 0 : i32
    return %c0_i32, %c0_i32_0 : i32, i32
  }
  func.func @transform_3(%arg0: i32) -> (i32, i32) {
    %c0_i32 = arith.constant 0 : i32
    %c0_i32_0 = arith.constant 0 : i32
    %c0_i32_1 = arith.constant 0 : i32
    return %c0_i32, %c0_i32_0 : i32, i32
  }
  func.func @transform_4(%arg0: i32) -> (i32, i32, i32) {
    %c0_i32 = arith.constant 0 : i32
    %c0_i32_0 = arith.constant 0 : i32
    %c0_i32_1 = arith.constant 0 : i32
    %c0_i32_2 = arith.constant 0 : i32
    return %c0_i32, %c0_i32_0, %c0_i32_1 : i32, i32, i32
  }
  func.func @transform_5(%arg0: i32) -> (i32, i32) {
    %c0_i32 = arith.constant 0 : i32
    %c0_i32_0 = arith.constant 0 : i32
    %c0_i32_1 = arith.constant 0 : i32
    return %c0_i32, %c0_i32_0 : i32, i32
  }
  func.func @transform_6(%arg0: i32) -> (i32, i32) {
    %c0_i32 = arith.constant 0 : i32
    %c0_i32_0 = arith.constant 0 : i32
    %c0_i32_1 = arith.constant 0 : i32
    return %c0_i32, %c0_i32_0 : i32, i32
  }
  func.func @transform_7(%arg0: i32) -> (i32, i32) {
    %c0_i32 = arith.constant 0 : i32
    %c0_i32_0 = arith.constant 0 : i32
    %c0_i32_1 = arith.constant 0 : i32
    return %c0_i32, %c0_i32_0 : i32, i32
  }
  func.func @transform_8(%arg0: i32) -> (i32, i32, i32, i32) {
    %c0_i32 = arith.constant 0 : i32
    %c0_i32_0 = arith.constant 0 : i32
    %c0_i32_1 = arith.constant 0 : i32
    %c0_i32_2 = arith.constant 0 : i32
    return %arg0, %c0_i32, %c0_i32_0, %c0_i32_1 : i32, i32, i32, i32
  }
}

</mosaic_0001>

<llo_original>
// kernel: attention_block_forward.1
$region0: #{attention_block_forward.1}
  #allocation0 [shape = 'u32[]', space=smem, size = 0x4, offset = 0x4, fixed_abs, tag = 'smem constant byte address 0x4 - core index']
  #allocation1 [shape = 'u32[144,128]{1,0:T(1,128)}', space=vmem, size = 0x12000, scoped, tag = 'internal scratch']
  #allocation2 [shape = 'f32[1,1]{1,0:T(1,128)S(1)}', space=vmem, size = 0x200, scoped, tag = 'scoped memory for attention_block_forward.1']
  %s0 = inlined_call_operand.vmem [shape: f32[2,4,64,32], index: 0, kind: input, shape index: {}]
  %s1 = inlined_call_operand.vmem [shape: f32[2,64,64], index: 1, kind: input, shape index: {}]
  %s2 = inlined_call_operand.vmem [shape: f32[32,16], index: 2, kind: input, shape index: {}]
  %s3 = inlined_call_operand.vmem [shape: f32[1,16], index: 3, kind: input, shape index: {}]
  %s4 = inlined_call_operand.vmem [shape: f32[4,64,16], index: 4, kind: input, shape index: {}]
  %s5 = inlined_call_operand.vmem [shape: f32[1,16], index: 5, kind: input, shape index: {}]
  %s6 = inlined_call_operand.vmem [shape: f32[1,16], index: 6, kind: input, shape index: {}]
  %s7 = inlined_call_operand.<no memory space> [shape: f32[1,1], index: 7, kind: input, shape index: {}]
  %s8 = inlined_call_operand.vmem [shape: f32[2,4,64,32], index: 8, kind: output, shape index: {}]
  %s9 = sld [smem:[#allocation0]]
  $region65: #{attention_block_forward.1} parent=0
    _
  %s11 = ssub.s32 1, %s9
  %s12 = scalar_select 0, %s11, %s9
  %v13 = vstv %s7
  %14 = vst [vmem:[#allocation2] sm:$0x1] %v13
  loop: start=0, step=1, limit=4
  $region2: #{attention_block_forward.1} parent=0 // loop_pre_header
    _
  $region3: #{attention_block_forward.1} parent=0 // loop_header
    %s16 = sphi 0, %s20
    %p17 = scmp.ge.s32.totalorder %s16, 4
    %s26 = sphi 0, %s28
    %s29 = sphi 0, %s26
    %s30 = sphi 0, %s29
    %s46 = sphi 0, %s30
    %s52 = sphi 0, %s54
    %s55 = sphi 0, %s52
    %s56 = sphi 0, %s55
    %s72 = sphi 0, %s56
    %s76 = sphi 0, %s76
    %s78 = sphi 0, %s76
    %s79 = sphi 0, %s78
    %s93 = sphi 0, %s79
    %s97 = sphi 0, %s97
    %s99 = sphi 0, %s97
    %s100 = sphi 0, %s99
    %s114 = sphi 0, %s100
    %s118 = sphi 0, %s118
    %s120 = sphi 0, %s118
    %s121 = sphi 0, %s120
    %s135 = sphi 0, %s121
    %s139 = sphi 0, %s139
    %s141 = sphi 0, %s139
    %s142 = sphi 0, %s141
    %s156 = sphi 0, %s142
    %s160 = sphi 0, %s160
    %s162 = sphi 0, %s160
    %s163 = sphi 0, %s162
    %s177 = sphi 0, %s163
    %s181 = sphi 0, %s181
    %s183 = sphi 0, %s181
    %s184 = sphi 0, %s183
    %s198 = sphi 0, %s184
    %s204 = sphi 0, %s206
    %s207 = sphi 0, %s204
    %s208 = sphi 0, %s207
    %s224 = sphi 0, %s208
  $region4: #{attention_block_forward.1} parent=0 // loop_header_branch
    %19 = sbr.rel (%p17) target = $region8
  $region5: #{attention_block_forward.1} parent=0 // loop_body
    %s21 = ssub.s32 %s16, 1
    %s22 = ssub.s32 %s16, 2
    %s23 = sadd.s32 %s16, 1
    %s24 = ssub.s32 %s16, %s23
    %p25 = scmp.eq.s32.totalorder %s24, 0
    %s27 = sadd.s32 %s26, 1
    %s28 = scalar_select %p25, %s26, %s27
    %p31 = pneg %p25
    %p32 = scmp.eq.s32.totalorder %s16, 1
    %p33 = por %p31, %p32
    %p34 = scmp.ne.s32.totalorder %s26, %s29
    %p35 = scmp.eq.s32.totalorder %s16, 0
    %p36 = por %p34, %p35
    %p37 = scmp.ne.s32.totalorder %s26, %s29
    %p38 = scmp.eq.s32.totalorder %s21, 1
    %p39 = por %p37, %p38
    %p40 = scmp.ne.s32.totalorder %s29, %s30
    %p41 = scmp.eq.s32.totalorder %s21, 0
    %p42 = por %p40, %p41
    %p43 = scmp.ne.s32.totalorder %s29, %s30
    %p44 = scmp.eq.s32.totalorder %s22, 1
    %p45 = por %p43, %p44
    %p47 = scmp.ne.s32.totalorder %s30, %s46
    %p48 = scmp.eq.s32.totalorder %s22, 0
    %p49 = por %p47, %p48
    %s50 = ssub.s32 %s16, %s23
    %p51 = scmp.eq.s32.totalorder %s50, 0
    %s53 = sadd.s32 %s52, 1
    %s54 = scalar_select %p51, %s52, %s53
    %p57 = pneg %p51
    %p58 = scmp.eq.s32.totalorder %s16, 1
    %p59 = por %p57, %p58
    %p60 = scmp.ne.s32.totalorder %s52, %s55
    %p61 = scmp.eq.s32.totalorder %s16, 0
    %p62 = por %p60, %p61
    %p63 = scmp.ne.s32.totalorder %s52, %s55
    %p64 = scmp.eq.s32.totalorder %s21, 1
    %p65 = por %p63, %p64
    %p66 = scmp.ne.s32.totalorder %s55, %s56
    %p67 = scmp.eq.s32.totalorder %s21, 0
    %p68 = por %p66, %p67
    %p69 = scmp.ne.s32.totalorder %s55, %s56
    %p70 = scmp.eq.s32.totalorder %s22, 1
    %p71 = por %p69, %p70
    %p73 = scmp.ne.s32.totalorder %s56, %s72
    %p74 = scmp.eq.s32.totalorder %s22, 0
    %p75 = por %p73, %p74
    %s77 = sadd.s32 %s76, 1
    %p80 = scmp.eq.s32.totalorder %s16, 1
    %p81 = scmp.ne.s32.totalorder %s76, %s78
    %p82 = scmp.eq.s32.totalorder %s16, 0
    %p83 = por %p81, %p82
    %p84 = scmp.ne.s32.totalorder %s76, %s78
    %p85 = scmp.eq.s32.totalorder %s21, 1
    %p86 = por %p84, %p85
    %p87 = scmp.ne.s32.totalorder %s78, %s79
    %p88 = scmp.eq.s32.totalorder %s21, 0
    %p89 = por %p87, %p88
    %p90 = scmp.ne.s32.totalorder %s78, %s79
    %p91 = scmp.eq.s32.totalorder %s22, 1
    %p92 = por %p90, %p91
    %p94 = scmp.ne.s32.totalorder %s79, %s93
    %p95 = scmp.eq.s32.totalorder %s22, 0
    %p96 = por %p94, %p95
    %s98 = sadd.s32 %s97, 1
    %p101 = scmp.eq.s32.totalorder %s16, 1
    %p102 = scmp.ne.s32.totalorder %s97, %s99
    %p103 = scmp.eq.s32.totalorder %s16, 0
    %p104 = por %p102, %p103
    %p105 = scmp.ne.s32.totalorder %s97, %s99
    %p106 = scmp.eq.s32.totalorder %s21, 1
    %p107 = por %p105, %p106
    %p108 = scmp.ne.s32.totalorder %s99, %s100
    %p109 = scmp.eq.s32.totalorder %s21, 0
    %p110 = por %p108, %p109
    %p111 = scmp.ne.s32.totalorder %s99, %s100
    %p112 = scmp.eq.s32.totalorder %s22, 1
    %p113 = por %p111, %p112
    %p115 = scmp.ne.s32.totalorder %s100, %s114
    %p116 = scmp.eq.s32.totalorder %s22, 0
    %p117 = por %p115, %p116
    %s119 = sadd.s32 %s118, 1
    %p122 = scmp.eq.s32.totalorder %s16, 1
    %p123 = scmp.ne.s32.totalorder %s118, %s120
    %p124 = scmp.eq.s32.totalorder %s16, 0
    %p125 = por %p123, %p124
    %p126 = scmp.ne.s32.totalorder %s118, %s120
    %p127 = scmp.eq.s32.totalorder %s21, 1
    %p128 = por %p126, %p127
    %p129 = scmp.ne.s32.totalorder %s120, %s121
    %p130 = scmp.eq.s32.totalorder %s21, 0
    %p131 = por %p129, %p130
    %p132 = scmp.ne.s32.totalorder %s120, %s121
    %p133 = scmp.eq.s32.totalorder %s22, 1
    %p134 = por %p132, %p133
    %p136 = scmp.ne.s32.totalorder %s121, %s135
    %p137 = scmp.eq.s32.totalorder %s22, 0
    %p138 = por %p136, %p137
    %s140 = sadd.s32 %s139, 1
    %p143 = scmp.eq.s32.totalorder %s16, 1
    %p144 = scmp.ne.s32.totalorder %s139, %s141
    %p145 = scmp.eq.s32.totalorder %s16, 0
    %p146 = por %p144, %p145
    %p147 = scmp.ne.s32.totalorder %s139, %s141
    %p148 = scmp.eq.s32.totalorder %s21, 1
    %p149 = por %p147, %p148
    %p150 = scmp.ne.s32.totalorder %s141, %s142
    %p151 = scmp.eq.s32.totalorder %s21, 0
    %p152 = por %p150, %p151
    %p153 = scmp.ne.s32.totalorder %s141, %s142
    %p154 = scmp.eq.s32.totalorder %s22, 1
    %p155 = por %p153, %p154
    %p157 = scmp.ne.s32.totalorder %s142, %s156
    %p158 = scmp.eq.s32.totalorder %s22, 0
    %p159 = por %p157, %p158
    %s161 = sadd.s32 %s160, 1
    %p164 = scmp.eq.s32.totalorder %s16, 1
    %p165 = scmp.ne.s32.totalorder %s160, %s162
    %p166 = scmp.eq.s32.totalorder %s16, 0
    %p167 = por %p165, %p166
    %p168 = scmp.ne.s32.totalorder %s160, %s162
    %p169 = scmp.eq.s32.totalorder %s21, 1
    %p170 = por %p168, %p169
    %p171 = scmp.ne.s32.totalorder %s162, %s163
    %p172 = scmp.eq.s32.totalorder %s21, 0
    %p173 = por %p171, %p172
    %p174 = scmp.ne.s32.totalorder %s162, %s163
    %p175 = scmp.eq.s32.totalorder %s22, 1
    %p176 = por %p174, %p175
    %p178 = scmp.ne.s32.totalorder %s163, %s177
    %p179 = scmp.eq.s32.totalorder %s22, 0
    %p180 = por %p178, %p179
    %s182 = sadd.s32 %s181, 1
    %p185 = scmp.eq.s32.totalorder %s16, 1
    %p186 = scmp.ne.s32.totalorder %s181, %s183
    %p187 = scmp.eq.s32.totalorder %s16, 0
    %p188 = por %p186, %p187
    %p189 = scmp.ne.s32.totalorder %s181, %s183
    %p190 = scmp.eq.s32.totalorder %s21, 1
    %p191 = por %p189, %p190
    %p192 = scmp.ne.s32.totalorder %s183, %s184
    %p193 = scmp.eq.s32.totalorder %s21, 0
    %p194 = por %p192, %p193
    %p195 = scmp.ne.s32.totalorder %s183, %s184
    %p196 = scmp.eq.s32.totalorder %s22, 1
    %p197 = por %p195, %p196
    %p199 = scmp.ne.s32.totalorder %s184, %s198
    %p200 = scmp.eq.s32.totalorder %s22, 0
    %p201 = por %p199, %p200
    %s202 = ssub.s32 %s16, %s23
    %p203 = scmp.eq.s32.totalorder %s202, 0
    %s205 = sadd.s32 %s204, 1
    %s206 = scalar_select %p203, %s204, %s205
    %p209 = pneg %p203
    %p210 = scmp.eq.s32.totalorder %s16, 1
    %p211 = por %p209, %p210
    %p212 = scmp.ne.s32.totalorder %s204, %s207
    %p213 = scmp.eq.s32.totalorder %s16, 0
    %p214 = por %p212, %p213
    %p215 = scmp.ne.s32.totalorder %s204, %s207
    %p216 = scmp.eq.s32.totalorder %s21, 1
    %p217 = por %p215, %p216
    %p218 = scmp.ne.s32.totalorder %s207, %s208
    %p219 = scmp.eq.s32.totalorder %s21, 0
    %p220 = por %p218, %p219
    %p221 = scmp.ne.s32.totalorder %s207, %s208
    %p222 = scmp.eq.s32.totalorder %s22, 1
    %p223 = por %p221, %p222
    %p225 = scmp.ne.s32.totalorder %s208, %s224
    %p226 = scmp.eq.s32.totalorder %s22, 0
    %p227 = por %p225, %p226
    %p228 = scmp.le.s32.totalorder 1, %s16
    %p229 = scmp.lt.s32.totalorder %s16, 3
    %p230 = pnand %p228, %p229
    %p231 = pneg %p230
    // Predicated region
    $region9: #{attention_block_forward.1} parent=5 // pred_check
      _
    $region10: #{attention_block_forward.1} parent=5 // pred_check_branch
      %233 = sbr.rel (%p230) target = $region12
    $region11: #{attention_block_forward.1} parent=5 // pred_region
      %s234 = ssub.s32 %s16, 1
      // Predicated region
      $region13: #{attention_block_forward.1} parent=11 // pred_check
        %p235 = pneg %p89
      $region14: #{attention_block_forward.1} parent=11 // pred_check_branch
        %237 = sbr.rel (%p235) target = $region16
      $region15: #{attention_block_forward.1} parent=11 // pred_region
        _
      $region16: #{attention_block_forward.1} parent=11 // pred_fallthru
        _
      // Predicated region
      $region17: #{attention_block_forward.1} parent=11 // pred_check
        %p238 = pneg %p110
      $region18: #{attention_block_forward.1} parent=11 // pred_check_branch
        %240 = sbr.rel (%p238) target = $region20
      $region19: #{attention_block_forward.1} parent=11 // pred_region
        _
      $region20: #{attention_block_forward.1} parent=11 // pred_fallthru
        _
      // Predicated region
      $region21: #{attention_block_forward.1} parent=11 // pred_check
        %p241 = pneg %p131
      $region22: #{attention_block_forward.1} parent=11 // pred_check_branch
        %243 = sbr.rel (%p241) target = $region24
      $region23: #{attention_block_forward.1} parent=11 // pred_region
        _
      $region24: #{attention_block_forward.1} parent=11 // pred_fallthru
        _
      // Predicated region
      $region25: #{attention_block_forward.1} parent=11 // pred_check
        %p244 = pneg %p152
      $region26: #{attention_block_forward.1} parent=11 // pred_check_branch
        %246 = sbr.rel (%p244) target = $region28
      $region27: #{attention_block_forward.1} parent=11 // pred_region
        _
      $region28: #{attention_block_forward.1} parent=11 // pred_fallthru
        _
      // Predicated region
      $region29: #{attention_block_forward.1} parent=11 // pred_check
        %p247 = pneg %p173
      $region30: #{attention_block_forward.1} parent=11 // pred_check_branch
        %249 = sbr.rel (%p247) target = $region32
      $region31: #{attention_block_forward.1} parent=11 // pred_region
        _
      $region32: #{attention_block_forward.1} parent=11 // pred_fallthru
        _
      // Predicated region
      $region33: #{attention_block_forward.1} parent=11 // pred_check
        %p250 = pneg %p194
      $region34: #{attention_block_forward.1} parent=11 // pred_check_branch
        %252 = sbr.rel (%p250) target = $region36
      $region35: #{attention_block_forward.1} parent=11 // pred_region
        _
      $region36: #{attention_block_forward.1} parent=11 // pred_fallthru
        _
    $region12: #{attention_block_forward.1} parent=5 // pred_fallthru
      _
    %p253 = scmp.lt.s32.totalorder %s16, 2
    // Predicated region
    $region37: #{attention_block_forward.1} parent=5 // pred_check
      %p254 = pneg %p253
    $region38: #{attention_block_forward.1} parent=5 // pred_check_branch
      %256 = sbr.rel (%p254) target = $region40
    $region39: #{attention_block_forward.1} parent=5 // pred_region
      // Predicated region
      $region41: #{attention_block_forward.1} parent=39 // pred_check
        %p257 = pneg %p36
      $region42: #{attention_block_forward.1} parent=39 // pred_check_branch
        %259 = sbr.rel (%p257) target = $region44
      $region43: #{attention_block_forward.1} parent=39 // pred_region
        %p260 = scmp.lt.s32.totalorder %s16, 1
        %s261 = scalar_select %p260, %s16, 1
        %s262 = smul.addr %s261, 32
        %s263 = smul.addr %s262, 8
        %s264 = scalar_lea.vmem %s0, %s263
      $region44: #{attention_block_forward.1} parent=39 // pred_fallthru
        _
      // Predicated region
      $region45: #{attention_block_forward.1} parent=39 // pred_check
        %p265 = pneg %p62
      $region46: #{attention_block_forward.1} parent=39 // pred_check_branch
        %267 = sbr.rel (%p265) target = $region48
      $region47: #{attention_block_forward.1} parent=39 // pred_region
        %p268 = scmp.lt.s32.totalorder %s16, 1
        %s269 = scalar_select %p268, %s16, 1
        %s270 = smul.addr %s269, 8
        %s271 = smul.addr %s270, 8
        %s272 = scalar_lea.vmem %s1, %s271
      $region48: #{attention_block_forward.1} parent=39 // pred_fallthru
        _
    $region40: #{attention_block_forward.1} parent=5 // pred_fallthru
      _
    %p273 = scmp.le.s32.totalorder 1, %s16
    %p274 = scmp.lt.s32.totalorder %s16, 3
    %p275 = pnand %p273, %p274
    %p276 = pneg %p275
    // Predicated region
    $region49: #{attention_block_forward.1} parent=5 // pred_check
      _
    $region50: #{attention_block_forward.1} parent=5 // pred_check_branch
      %278 = sbr.rel (%p275) target = $region52
    $region51: #{attention_block_forward.1} parent=5 // pred_region
      %s279 = ssub.s32 %s16, 1
      %p280 = scmp.lt.s32.totalorder %s21, 1
      %s281 = scalar_select %p280, %s21, 1
      %s282 = smul.addr %s281, 32
      %s283 = smul.addr %s282, 8
      %s284 = scalar_lea.vmem %s0, %s283
      %p285 = pneg %p42
      %p286 = pneg %p39
      %p287 = scmp.lt.s32.totalorder %s21, 1
      %s288 = scalar_select %p287, %s21, 1
      %s289 = smul.addr %s288, 8
      %s290 = smul.addr %s289, 8
      %s291 = scalar_lea.vmem %s1, %s290
      %p292 = pneg %p68
      %p293 = pneg %p65
      %p294 = pneg %p89
      %p295 = pneg %p86
      %p296 = pneg %p110
      %p297 = pneg %p107
      %p298 = pneg %p131
      %p299 = pneg %p128
      %p300 = pneg %p152
      %p301 = pneg %p149
      %p302 = pneg %p173
      %p303 = pneg %p170
      %p304 = pneg %p194
      %p305 = pneg %p191
      %p306 = pneg %p220
      %p307 = pneg %p217
      %p308 = scmp.lt.s32.totalorder %s21, 1
      %s309 = scalar_select %p308, %s21, 1
      %s310 = smul.addr %s309, 32
      %s311 = smul.addr %s310, 8
      %s312 = scalar_lea.vmem %s8, %s311
      %p313 = scmp.lt.s32.totalorder %s21, 1
      %s314 = scalar_select %p313, %s21, 1
      %s315 = smul.addr %s314, 32
      %s316 = smul.addr %s315, 8
      %s317 = scalar_lea.vmem %s0, %s316
      %p318 = scmp.lt.s32.totalorder %s21, 1
      %s319 = scalar_select %p318, %s21, 1
      %s320 = smul.addr %s319, 8
      %s321 = smul.addr %s320, 8
      %s322 = scalar_lea.vmem %s1, %s321
      %p323 = scmp.lt.s32.totalorder %s21, 1
      %s324 = scalar_select %p323, %s21, 1
      %s325 = smul.addr %s324, 32
      %s326 = smul.addr %s325, 8
      %s327 = scalar_lea.vmem %s8, %s326
      %v328 = vld [vmem:[%s322] sm:$0xff]
      %v329 = vld [vmem:[%s322 + $0x8] sm:$0xff]
      %v330 = vld [vmem:[%s322 + $0x10] sm:$0xff]
      %v331 = vld [vmem:[%s322 + $0x18] sm:$0xff]
      %v332 = vld [vmem:[%s322 + $0x20] sm:$0xff]
      %v333 = vld [vmem:[%s322 + $0x28] sm:$0xff]
      %v334 = vld [vmem:[%s322 + $0x30] sm:$0xff]
      %v335 = vld [vmem:[%s322 + $0x38] sm:$0xff]
      %v336 = vld [vmem:[%s317] sm:$0xff]
      %v337 = vld [vmem:[%s317 + $0x8] sm:$0xff]
      %v338 = vld [vmem:[%s317 + $0x10] sm:$0xff]
      %v339 = vld [vmem:[%s317 + $0x18] sm:$0xff]
      %v340 = vld [vmem:[%s317 + $0x20] sm:$0xff]
      %v341 = vld [vmem:[%s317 + $0x28] sm:$0xff]
      %v342 = vld [vmem:[%s317 + $0x30] sm:$0xff]
      %v343 = vld [vmem:[%s317 + $0x38] sm:$0xff]
      %v344 = vld [vmem:[%s2] sm:$0xff]
      %v345 = vld [vmem:[%s2 + $0x8] sm:$0xff]
      %v346 = vld [vmem:[%s2 + $0x10] sm:$0xff]
      %v347 = vld [vmem:[%s2 + $0x18] sm:$0xff]
      %v348 = vld [vmem:[%s3] sm:$0x1]
      %v350 = vlaneseq
      %v351 = vshrl.u32 %v350, 7
      %v352 = vsub.s32 0, %v351
      %v353 = vrot.slane %v348, %v352
      %vm355 = vcmask 261120
      %v357 = vsel %vm355, %v336, 0
      %v360 = vsel %vm355, %v337, 0
      %v363 = vsel %vm355, %v338, 0
      %v366 = vsel %vm355, %v339, 0
      %v369 = vsel %vm355, %v340, 0
      %v372 = vsel %vm355, %v341, 0
      %v375 = vsel %vm355, %v342, 0
      %v378 = vsel %vm355, %v343, 0
      %380 = vmatprep.subr.mxu0 0.0
      %381 = vmatpush1.msra.mxu0 0.0
      %382 = vmatprep.subr.mxu0 0.0
      %383 = vmatpush1.msra.mxu0 0.0
      %384 = vmatprep.subr.mxu0 0.0
      %385 = vmatpush1.msra.mxu0 0.0
      %386 = vmatprep.subr.mxu0 0.0
      %387 = vmatpush1.msra.mxu0 0.0
      %388 = vmatprep.subr.mxu0 0.0
      %389 = vmatpush1.msra.mxu0 0.0
      %390 = vmatprep.subr.mxu0 0.0
      %391 = vmatpush1.msra.mxu0 0.0
      %392 = vmatprep.subr.mxu0 0.0
      %393 = vmatpush1.msra.mxu0 0.0
      %394 = vmatprep.subr.mxu0 0.0
      %395 = vmatpush1.msra.mxu0 0.0
      %396 = vmatprep.subr.mxu0 0.0
      %397 = vmatpush1.msra.mxu0 0.0
      %398 = vmatprep.subr.mxu0 0.0
      %399 = vmatpush1.msra.mxu0 0.0
      %400 = vmatprep.subr.mxu0 0.0
      %401 = vmatpush1.msra.mxu0 0.0
      %402 = vmatprep.subr.mxu0 0.0
      %403 = vmatpush1.msra.mxu0 0.0
      %404 = vmatprep.subr.mxu0 0.0
      %405 = vmatpush1.msra.mxu0 %v347
      %406 = vmatprep.subr.mxu0 0.0
      %407 = vmatpush1.msra.mxu0 %v346
      %408 = vmatprep.subr.mxu0 0.0
      %409 = vmatpush1.msra.mxu0 %v345
      %410 = vmatprep.subr.mxu0 0.0
      %411 = vmatpush1.msra.mxu0 %v344
      %412 = vmatprep.subr.mxu0 0.0
      %413 = vmatpush2.msra.mxu0 0.0
      %414 = vmatprep.subr.mxu0 0.0
      %415 = vmatpush2.msra.mxu0 0.0
      %416 = vmatprep.subr.mxu0 0.0
      %417 = vmatpush2.msra.mxu0 0.0
      %418 = vmatprep.subr.mxu0 0.0
      %419 = vmatpush2.msra.mxu0 0.0
      %420 = vmatprep.subr.mxu0 0.0
      %421 = vmatpush2.msra.mxu0 0.0
      %422 = vmatprep.subr.mxu0 0.0
      %423 = vmatpush2.msra.mxu0 0.0
      %424 = vmatprep.subr.mxu0 0.0
      %425 = vmatpush2.msra.mxu0 0.0
      %426 = vmatprep.subr.mxu0 0.0
      %427 = vmatpush2.msra.mxu0 0.0
      %428 = vmatprep.subr.mxu0 0.0
      %429 = vmatpush2.msra.mxu0 0.0
      %430 = vmatprep.subr.mxu0 0.0
      %431 = vmatpush2.msra.mxu0 0.0
      %432 = vmatprep.subr.mxu0 0.0
      %433 = vmatpush2.msra.mxu0 0.0
      %434 = vmatprep.subr.mxu0 0.0
      %435 = vmatpush2.msra.mxu0 0.0
      %436 = vmatprep.subr.mxu0 0.0
      %437 = vmatpush2.msra.mxu0 0.0
      %438 = vmatprep.subr.mxu0 0.0
      %439 = vmatpush2.msra.mxu0 0.0
      %440 = vmatprep.subr.mxu0 0.0
      %441 = vmatpush2.msra.mxu0 0.0
      %442 = vmatprep.subr.mxu0 0.0
      %443 = vmatpush2.msra.mxu0 0.0
      %444 = vmatprep.mubr.f32.mxu0 0.0
      %445 = vmatmul.mubr.f32.gmra.mxu0 %v357
      %v446 = vpop.f32.mrf.mxu0
      %v447 = vadd.f32 %v353, %v446
      %v448 = vpop.f32.mrf.mxu0
      %449 = vmatprep.mubr.f32.mxu0 0.0
      %450 = vmatmul.mubr.f32.gmra.mxu0 %v360
      %v451 = vpop.f32.mrf.mxu0
      %v452 = vadd.f32 %v353, %v451
      %v453 = vpop.f32.mrf.mxu0
      %454 = vmatprep.mubr.f32.mxu0 0.0
      %455 = vmatmul.mubr.f32.gmra.mxu0 %v363
      %v456 = vpop.f32.mrf.mxu0
      %v457 = vadd.f32 %v353, %v456
      %v458 = vpop.f32.mrf.mxu0
      %459 = vmatprep.mubr.f32.mxu0 0.0
      %460 = vmatmul.mubr.f32.gmra.mxu0 %v366
      %v461 = vpop.f32.mrf.mxu0
      %v462 = vadd.f32 %v353, %v461
      %v463 = vpop.f32.mrf.mxu0
      %464 = vmatprep.mubr.f32.mxu0 0.0
      %465 = vmatmul.mubr.f32.gmra.mxu0 %v369
      %v466 = vpop.f32.mrf.mxu0
      %v467 = vadd.f32 %v353, %v466
      %v468 = vpop.f32.mrf.mxu0
      %469 = vmatprep.mubr.f32.mxu0 0.0
      %470 = vmatmul.mubr.f32.gmra.mxu0 %v372
      %v471 = vpop.f32.mrf.mxu0
      %v472 = vadd.f32 %v353, %v471
      %v473 = vpop.f32.mrf.mxu0
      %474 = vmatprep.mubr.f32.mxu0 0.0
      %475 = vmatmul.mubr.f32.gmra.mxu0 %v375
      %v476 = vpop.f32.mrf.mxu0
      %v477 = vadd.f32 %v353, %v476
      %v478 = vpop.f32.mrf.mxu0
      %479 = vmatprep.mubr.f32.mxu0 0.0
      %480 = vmatmul.mubr.f32.gmra.mxu0 %v378
      %v481 = vpop.f32.mrf.mxu0
      %v482 = vadd.f32 %v353, %v481
      %v483 = vpop.f32.mrf.mxu0
      %484 = vdwg.mxu0
      %v485 = vld [vmem:[%s4] sm:$0xff]
      %v486 = vld [vmem:[%s4 + $0x8] sm:$0xff]
      %v487 = vld [vmem:[%s4 + $0x10] sm:$0xff]
      %v488 = vld [vmem:[%s4 + $0x18] sm:$0xff]
      %v489 = vld [vmem:[%s4 + $0x20] sm:$0xff]
      %v490 = vld [vmem:[%s4 + $0x28] sm:$0xff]
      %v491 = vld [vmem:[%s4 + $0x30] sm:$0xff]
      %v492 = vld [vmem:[%s4 + $0x38] sm:$0xff]
      %v493 = vld [vmem:[%s5] sm:$0x1]
      %v495 = vlaneseq
      %v496 = vshrl.u32 %v495, 7
      %v497 = vsub.s32 0, %v496
      %v498 = vrot.slane %v493, %v497
      %vm500 = vcmask 523264
      %v502 = vsel %vm500, %v328, 0
      %v505 = vsel %vm500, %v329, 0
      %v508 = vsel %vm500, %v330, 0
      %v511 = vsel %vm500, %v331, 0
      %v514 = vsel %vm500, %v332, 0
      %v517 = vsel %vm500, %v333, 0
      %v520 = vsel %vm500, %v334, 0
      %v523 = vsel %vm500, %v335, 0
      %525 = vmatprep.subr.mxu0 0.0
      %526 = vmatpush1.msra.mxu0 0.0
      %527 = vmatprep.subr.mxu0 0.0
      %528 = vmatpush1.msra.mxu0 0.0
      %529 = vmatprep.subr.mxu0 0.0
      %530 = vmatpush1.msra.mxu0 0.0
      %531 = vmatprep.subr.mxu0 0.0
      %532 = vmatpush1.msra.mxu0 0.0
      %533 = vmatprep.subr.mxu0 0.0
      %534 = vmatpush1.msra.mxu0 0.0
      %535 = vmatprep.subr.mxu0 0.0
      %536 = vmatpush1.msra.mxu0 0.0
      %537 = vmatprep.subr.mxu0 0.0
      %538 = vmatpush1.msra.mxu0 0.0
      %539 = vmatprep.subr.mxu0 0.0
      %540 = vmatpush1.msra.mxu0 0.0
      %541 = vmatprep.subr.mxu0 0.0
      %542 = vmatpush1.msra.mxu0 %v492
      %543 = vmatprep.subr.mxu0 0.0
      %544 = vmatpush1.msra.mxu0 %v491
      %545 = vmatprep.subr.mxu0 0.0
      %546 = vmatpush1.msra.mxu0 %v490
      %547 = vmatprep.subr.mxu0 0.0
      %548 = vmatpush1.msra.mxu0 %v489
      %549 = vmatprep.subr.mxu0 0.0
      %550 = vmatpush1.msra.mxu0 %v488
      %551 = vmatprep.subr.mxu0 0.0
      %552 = vmatpush1.msra.mxu0 %v487
      %553 = vmatprep.subr.mxu0 0.0
      %554 = vmatpush1.msra.mxu0 %v486
      %555 = vmatprep.subr.mxu0 0.0
      %556 = vmatpush1.msra.mxu0 %v485
      %557 = vmatprep.subr.mxu0 0.0
      %558 = vmatpush2.msra.mxu0 0.0
      %559 = vmatprep.subr.mxu0 0.0
      %560 = vmatpush2.msra.mxu0 0.0
      %561 = vmatprep.subr.mxu0 0.0
      %562 = vmatpush2.msra.mxu0 0.0
      %563 = vmatprep.subr.mxu0 0.0
      %564 = vmatpush2.msra.mxu0 0.0
      %565 = vmatprep.subr.mxu0 0.0
      %566 = vmatpush2.msra.mxu0 0.0
      %567 = vmatprep.subr.mxu0 0.0
      %568 = vmatpush2.msra.mxu0 0.0
      %569 = vmatprep.subr.mxu0 0.0
      %570 = vmatpush2.msra.mxu0 0.0
      %571 = vmatprep.subr.mxu0 0.0
      %572 = vmatpush2.msra.mxu0 0.0
      %573 = vmatprep.subr.mxu0 0.0
      %574 = vmatpush2.msra.mxu0 0.0
      %575 = vmatprep.subr.mxu0 0.0
      %576 = vmatpush2.msra.mxu0 0.0
      %577 = vmatprep.subr.mxu0 0.0
      %578 = vmatpush2.msra.mxu0 0.0
      %579 = vmatprep.subr.mxu0 0.0
      %580 = vmatpush2.msra.mxu0 0.0
      %581 = vmatprep.subr.mxu0 0.0
      %582 = vmatpush2.msra.mxu0 0.0
      %583 = vmatprep.subr.mxu0 0.0
      %584 = vmatpush2.msra.mxu0 0.0
      %585 = vmatprep.subr.mxu0 0.0
      %586 = vmatpush2.msra.mxu0 0.0
      %587 = vmatprep.subr.mxu0 0.0
      %588 = vmatpush2.msra.mxu0 0.0
      %589 = vmatprep.mubr.f32.mxu0 0.0
      %590 = vmatmul.mubr.f32.gmra.mxu0 %v502
      %v591 = vpop.f32.mrf.mxu0
      %v592 = vadd.f32 %v498, %v591
      %v593 = vpop.f32.mrf.mxu0
      %594 = vmatprep.mubr.f32.mxu0 0.0
      %595 = vmatmul.mubr.f32.gmra.mxu0 %v505
      %v596 = vpop.f32.mrf.mxu0
      %v597 = vadd.f32 %v498, %v596
      %v598 = vpop.f32.mrf.mxu0
      %599 = vmatprep.mubr.f32.mxu0 0.0
      %600 = vmatmul.mubr.f32.gmra.mxu0 %v508
      %v601 = vpop.f32.mrf.mxu0
      %v602 = vadd.f32 %v498, %v601
      %v603 = vpop.f32.mrf.mxu0
      %604 = vmatprep.mubr.f32.mxu0 0.0
      %605 = vmatmul.mubr.f32.gmra.mxu0 %v511
      %v606 = vpop.f32.mrf.mxu0
      %v607 = vadd.f32 %v498, %v606
      %v608 = vpop.f32.mrf.mxu0
      %609 = vmatprep.mubr.f32.mxu0 0.0
      %610 = vmatmul.mubr.f32.gmra.mxu0 %v514
      %v611 = vpop.f32.mrf.mxu0
      %v612 = vadd.f32 %v498, %v611
      %v613 = vpop.f32.mrf.mxu0
      %614 = vmatprep.mubr.f32.mxu0 0.0
      %615 = vmatmul.mubr.f32.gmra.mxu0 %v517
      %v616 = vpop.f32.mrf.mxu0
      %v617 = vadd.f32 %v498, %v616
      %v618 = vpop.f32.mrf.mxu0
      %619 = vmatprep.mubr.f32.mxu0 0.0
      %620 = vmatmul.mubr.f32.gmra.mxu0 %v520
      %v621 = vpop.f32.mrf.mxu0
      %v622 = vadd.f32 %v498, %v621
      %v623 = vpop.f32.mrf.mxu0
      %624 = vmatprep.mubr.f32.mxu0 0.0
      %625 = vmatmul.mubr.f32.gmra.mxu0 %v523
      %v626 = vpop.f32.mrf.mxu0
      %v627 = vadd.f32 %v498, %v626
      %v628 = vpop.f32.mrf.mxu0
      %629 = vdwg.mxu0
      %v630 = vadd.f32 %v447, %v592
      %v631 = vadd.f32 %v452, %v597
      %v632 = vadd.f32 %v457, %v602
      %v633 = vadd.f32 %v462, %v607
      %v634 = vadd.f32 %v467, %v612
      %v635 = vadd.f32 %v472, %v617
      %v636 = vadd.f32 %v477, %v622
      %v637 = vadd.f32 %v482, %v627
      %v638 = vmax.f32 %v630, 0.0
      %v639 = vmax.f32 %v631, 0.0
      %v640 = vmax.f32 %v632, 0.0
      %v641 = vmax.f32 %v633, 0.0
      %v642 = vmax.f32 %v634, 0.0
      %v643 = vmax.f32 %v635, 0.0
      %v644 = vmax.f32 %v636, 0.0
      %v645 = vmax.f32 %v637, 0.0
      %v646 = vld [vmem:[%s6] sm:$0x1]
      %v648 = vlaneseq
      %v649 = vshrl.u32 %v648, 7
      %v650 = vsub.s32 0, %v649
      %v651 = vrot.slane %v646, %v650
      %v653 = vmul.f32 %v638, %v651
      %v654 = vmul.f32 %v639, %v651
      %v655 = vmul.f32 %v640, %v651
      %v656 = vmul.f32 %v641, %v651
      %v657 = vmul.f32 %v642, %v651
      %v658 = vmul.f32 %v643, %v651
      %v659 = vmul.f32 %v644, %v651
      %v660 = vmul.f32 %v645, %v651
      %vm661 = vcmask 130048
      %v662 = vsel %vm661, %v653, 0.0
      %663 = vadd.xlane.f32.xlu0 %v662
      %v664 = vpop.xlane.xlu0 %663
      %v665 = vsel %vm661, %v654, 0.0
      %666 = vadd.xlane.f32.xlu0 %v665
      %v667 = vpop.xlane.xlu0 %666
      %v668 = vsel %vm661, %v655, 0.0
      %669 = vadd.xlane.f32.xlu0 %v668
      %v670 = vpop.xlane.xlu0 %669
      %v671 = vsel %vm661, %v656, 0.0
      %672 = vadd.xlane.f32.xlu0 %v671
      %v673 = vpop.xlane.xlu0 %672
      %v674 = vsel %vm661, %v657, 0.0
      %675 = vadd.xlane.f32.xlu0 %v674
      %v676 = vpop.xlane.xlu0 %675
      %v677 = vsel %vm661, %v658, 0.0
      %678 = vadd.xlane.f32.xlu0 %v677
      %v679 = vpop.xlane.xlu0 %678
      %v680 = vsel %vm661, %v659, 0.0
      %681 = vadd.xlane.f32.xlu0 %v680
      %v682 = vpop.xlane.xlu0 %681
      %v683 = vsel %vm661, %v660, 0.0
      %684 = vadd.xlane.f32.xlu0 %v683
      %v685 = vpop.xlane.xlu0 %684
      %v686 = vld [vmem:[#allocation2] sm:$0x1]
      %v688 = vlaneseq
      %v689 = vshrl.u32 %v688, 7
      %v690 = vsub.s32 0, %v689
      %v691 = vrot.slane %v686, %v690
      %v693 = vadd.f32 %v664, %v691
      %v694 = vadd.f32 %v667, %v691
      %v695 = vadd.f32 %v670, %v691
      %v696 = vadd.f32 %v673, %v691
      %v697 = vadd.f32 %v676, %v691
      %v698 = vadd.f32 %v679, %v691
      %v699 = vadd.f32 %v682, %v691
      %v700 = vadd.f32 %v685, %v691
      %v701 = vsub.f32 0.0, %v693
      %v702 = vsub.f32 0.0, %v694
      %v703 = vsub.f32 0.0, %v695
      %v704 = vsub.f32 0.0, %v696
      %v705 = vsub.f32 0.0, %v697
      %v706 = vsub.f32 0.0, %v698
      %v707 = vsub.f32 0.0, %v699
      %v708 = vsub.f32 0.0, %v700
      %v709 = vmul.f32 %v701, 1.442695
      %v710 = vpow.pop %v709
      %v711 = vmul.f32 %v702, 1.442695
      %v712 = vpow.pop %v711
      %v713 = vmul.f32 %v703, 1.442695
      %v714 = vpow.pop %v713
      %v715 = vmul.f32 %v704, 1.442695
      %v716 = vpow.pop %v715
      %v717 = vmul.f32 %v705, 1.442695
      %v718 = vpow.pop %v717
      %v719 = vmul.f32 %v706, 1.442695
      %v720 = vpow.pop %v719
      %v721 = vmul.f32 %v707, 1.442695
      %v722 = vpow.pop %v721
      %v723 = vmul.f32 %v708, 1.442695
      %v724 = vpow.pop %v723
      %v725 = vadd.f32 %v710, 1.0
      %v726 = vadd.f32 %v712, 1.0
      %v727 = vadd.f32 %v714, 1.0
      %v728 = vadd.f32 %v716, 1.0
      %v729 = vadd.f32 %v718, 1.0
      %v730 = vadd.f32 %v720, 1.0
      %v731 = vadd.f32 %v722, 1.0
      %v732 = vadd.f32 %v724, 1.0
      %v733 = vrcp.pop %v725
      %v734 = vmul.f32 1.0, %v733
      %v735 = vrcp.pop %v726
      %v736 = vmul.f32 1.0, %v735
      %v737 = vrcp.pop %v727
      %v738 = vmul.f32 1.0, %v737
      %v739 = vrcp.pop %v728
      %v740 = vmul.f32 1.0, %v739
      %v741 = vrcp.pop %v729
      %v742 = vmul.f32 1.0, %v741
      %v743 = vrcp.pop %v730
      %v744 = vmul.f32 1.0, %v743
      %v745 = vrcp.pop %v731
      %v746 = vmul.f32 1.0, %v745
      %v747 = vrcp.pop %v732
      %v748 = vmul.f32 1.0, %v747
      %750 = vset.pattern.permute.xlu0 0
      %751 = vperm.xlu0 %750, %v734
      %v752 = vpop.permute.xlu0 %751
      %755 = vset.pattern.permute.xlu0 0
      %756 = vperm.xlu0 %755, %v736
      %v757 = vpop.permute.xlu0 %756
      %760 = vset.pattern.permute.xlu0 0
      %761 = vperm.xlu0 %760, %v738
      %v762 = vpop.permute.xlu0 %761
      %765 = vset.pattern.permute.xlu0 0
      %766 = vperm.xlu0 %765, %v740
      %v767 = vpop.permute.xlu0 %766
      %770 = vset.pattern.permute.xlu0 0
      %771 = vperm.xlu0 %770, %v742
      %v772 = vpop.permute.xlu0 %771
      %775 = vset.pattern.permute.xlu0 0
      %776 = vperm.xlu0 %775, %v744
      %v777 = vpop.permute.xlu0 %776
      %780 = vset.pattern.permute.xlu0 0
      %781 = vperm.xlu0 %780, %v746
      %v782 = vpop.permute.xlu0 %781
      %785 = vset.pattern.permute.xlu0 0
      %786 = vperm.xlu0 %785, %v748
      %v787 = vpop.permute.xlu0 %786
      %v789 = vmul.f32 %v752, %v336
      %v790 = vmul.f32 %v757, %v337
      %v791 = vmul.f32 %v762, %v338
      %v792 = vmul.f32 %v767, %v339
      %v793 = vmul.f32 %v772, %v340
      %v794 = vmul.f32 %v777, %v341
      %v795 = vmul.f32 %v782, %v342
      %v796 = vmul.f32 %v787, %v343
      %797 = vst.msk [vmem:[%s327] sm:$0xff] %vm355, %v789
      %798 = vst.msk [vmem:[%s327 + $0x8] sm:$0xff] %vm355, %v790
      %799 = vst.msk [vmem:[%s327 + $0x10] sm:$0xff] %vm355, %v791
      %800 = vst.msk [vmem:[%s327 + $0x18] sm:$0xff] %vm355, %v792
      %801 = vst.msk [vmem:[%s327 + $0x20] sm:$0xff] %vm355, %v793
      %802 = vst.msk [vmem:[%s327 + $0x28] sm:$0xff] %vm355, %v794
      %803 = vst.msk [vmem:[%s327 + $0x30] sm:$0xff] %vm355, %v795
      %804 = vst.msk [vmem:[%s327 + $0x38] sm:$0xff] %vm355, %v796
      %s805 = scalar_lea.vmem %s317, 64
      %v806 = vld [vmem:[%s805] sm:$0xff]
      %v807 = vld [vmem:[%s805 + $0x8] sm:$0xff]
      %v808 = vld [vmem:[%s805 + $0x10] sm:$0xff]
      %v809 = vld [vmem:[%s805 + $0x18] sm:$0xff]
      %v810 = vld [vmem:[%s805 + $0x20] sm:$0xff]
      %v811 = vld [vmem:[%s805 + $0x28] sm:$0xff]
      %v812 = vld [vmem:[%s805 + $0x30] sm:$0xff]
      %v813 = vld [vmem:[%s805 + $0x38] sm:$0xff]
      %v814 = vld [vmem:[%s2] sm:$0xff]
      %v815 = vld [vmem:[%s2 + $0x8] sm:$0xff]
      %v816 = vld [vmem:[%s2 + $0x10] sm:$0xff]
      %v817 = vld [vmem:[%s2 + $0x18] sm:$0xff]
      %v818 = vld [vmem:[%s3] sm:$0x1]
      %v820 = vlaneseq
      %v821 = vshrl.u32 %v820, 7
      %v822 = vsub.s32 0, %v821
      %v823 = vrot.slane %v818, %v822
      %v826 = vsel %vm355, %v806, 0
      %v829 = vsel %vm355, %v807, 0
      %v832 = vsel %vm355, %v808, 0
      %v835 = vsel %vm355, %v809, 0
      %v838 = vsel %vm355, %v810, 0
      %v841 = vsel %vm355, %v811, 0
      %v844 = vsel %vm355, %v812, 0
      %v847 = vsel %vm355, %v813, 0
      %849 = vmatprep.subr.mxu0 0.0
      %850 = vmatpush1.msra.mxu0 0.0
      %851 = vmatprep.subr.mxu0 0.0
      %852 = vmatpush1.msra.mxu0 0.0
      %853 = vmatprep.subr.mxu0 0.0
      %854 = vmatpush1.msra.mxu0 0.0
      %855 = vmatprep.subr.mxu0 0.0
      %856 = vmatpush1.msra.mxu0 0.0
      %857 = vmatprep.subr.mxu0 0.0
      %858 = vmatpush1.msra.mxu0 0.0
      %859 = vmatprep.subr.mxu0 0.0
      %860 = vmatpush1.msra.mxu0 0.0
      %861 = vmatprep.subr.mxu0 0.0
      %862 = vmatpush1.msra.mxu0 0.0
      %863 = vmatprep.subr.mxu0 0.0
      %864 = vmatpush1.msra.mxu0 0.0
      %865 = vmatprep.subr.mxu0 0.0
      %866 = vmatpush1.msra.mxu0 0.0
      %867 = vmatprep.subr.mxu0 0.0
      %868 = vmatpush1.msra.mxu0 0.0
      %869 = vmatprep.subr.mxu0 0.0
      %870 = vmatpush1.msra.mxu0 0.0
      %871 = vmatprep.subr.mxu0 0.0
      %872 = vmatpush1.msra.mxu0 0.0
      %873 = vmatprep.subr.mxu0 0.0
      %874 = vmatpush1.msra.mxu0 %v817
      %875 = vmatprep.subr.mxu0 0.0
      %876 = vmatpush1.msra.mxu0 %v816
      %877 = vmatprep.subr.mxu0 0.0
      %878 = vmatpush1.msra.mxu0 %v815
      %879 = vmatprep.subr.mxu0 0.0
      %880 = vmatpush1.msra.mxu0 %v814
      %881 = vmatprep.subr.mxu0 0.0
      %882 = vmatpush2.msra.mxu0 0.0
      %883 = vmatprep.subr.mxu0 0.0
      %884 = vmatpush2.msra.mxu0 0.0
      %885 = vmatprep.subr.mxu0 0.0
      %886 = vmatpush2.msra.mxu0 0.0
      %887 = vmatprep.subr.mxu0 0.0
      %888 = vmatpush2.msra.mxu0 0.0
      %889 = vmatprep.subr.mxu0 0.0
      %890 = vmatpush2.msra.mxu0 0.0
      %891 = vmatprep.subr.mxu0 0.0
      %892 = vmatpush2.msra.mxu0 0.0
      %893 = vmatprep.subr.mxu0 0.0
      %894 = vmatpush2.msra.mxu0 0.0
      %895 = vmatprep.subr.mxu0 0.0
      %896 = vmatpush2.msra.mxu0 0.0
      %897 = vmatprep.subr.mxu0 0.0
      %898 = vmatpush2.msra.mxu0 0.0
      %899 = vmatprep.subr.mxu0 0.0
      %900 = vmatpush2.msra.mxu0 0.0
      %901 = vmatprep.subr.mxu0 0.0
      %902 = vmatpush2.msra.mxu0 0.0
      %903 = vmatprep.subr.mxu0 0.0
      %904 = vmatpush2.msra.mxu0 0.0
      %905 = vmatprep.subr.mxu0 0.0
      %906 = vmatpush2.msra.mxu0 0.0
      %907 = vmatprep.subr.mxu0 0.0
      %908 = vmatpush2.msra.mxu0 0.0
      %909 = vmatprep.subr.mxu0 0.0
      %910 = vmatpush2.msra.mxu0 0.0
      %911 = vmatprep.subr.mxu0 0.0
      %912 = vmatpush2.msra.mxu0 0.0
      %913 = vmatprep.mubr.f32.mxu0 0.0
      %914 = vmatmul.mubr.f32.gmra.mxu0 %v826
      %v915 = vpop.f32.mrf.mxu0
      %v916 = vadd.f32 %v823, %v915
      %v917 = vpop.f32.mrf.mxu0
      %918 = vmatprep.mubr.f32.mxu0 0.0
      %919 = vmatmul.mubr.f32.gmra.mxu0 %v829
      %v920 = vpop.f32.mrf.mxu0
      %v921 = vadd.f32 %v823, %v920
      %v922 = vpop.f32.mrf.mxu0
      %923 = vmatprep.mubr.f32.mxu0 0.0
      %924 = vmatmul.mubr.f32.gmra.mxu0 %v832
      %v925 = vpop.f32.mrf.mxu0
      %v926 = vadd.f32 %v823, %v925
      %v927 = vpop.f32.mrf.mxu0
      %928 = vmatprep.mubr.f32.mxu0 0.0
      %929 = vmatmul.mubr.f32.gmra.mxu0 %v835
      %v930 = vpop.f32.mrf.mxu0
      %v931 = vadd.f32 %v823, %v930
      %v932 = vpop.f32.mrf.mxu0
      %933 = vmatprep.mubr.f32.mxu0 0.0
      %934 = vmatmul.mubr.f32.gmra.mxu0 %v838
      %v935 = vpop.f32.mrf.mxu0
      %v936 = vadd.f32 %v823, %v935
      %v937 = vpop.f32.mrf.mxu0
      %938 = vmatprep.mubr.f32.mxu0 0.0
      %939 = vmatmul.mubr.f32.gmra.mxu0 %v841
      %v940 = vpop.f32.mrf.mxu0
      %v941 = vadd.f32 %v823, %v940
      %v942 = vpop.f32.mrf.mxu0
      %943 = vmatprep.mubr.f32.mxu0 0.0
      %944 = vmatmul.mubr.f32.gmra.mxu0 %v844
      %v945 = vpop.f32.mrf.mxu0
      %v946 = vadd.f32 %v823, %v945
      %v947 = vpop.f32.mrf.mxu0
      %948 = vmatprep.mubr.f32.mxu0 0.0
      %949 = vmatmul.mubr.f32.gmra.mxu0 %v847
      %v950 = vpop.f32.mrf.mxu0
      %v951 = vadd.f32 %v823, %v950
      %v952 = vpop.f32.mrf.mxu0
      %953 = vdwg.mxu0
      %s954 = scalar_lea.vmem %s4, 64
      %v955 = vld [vmem:[%s954] sm:$0xff]
      %v956 = vld [vmem:[%s954 + $0x8] sm:$0xff]
      %v957 = vld [vmem:[%s954 + $0x10] sm:$0xff]
      %v958 = vld [vmem:[%s954 + $0x18] sm:$0xff]
      %v959 = vld [vmem:[%s954 + $0x20] sm:$0xff]
      %v960 = vld [vmem:[%s954 + $0x28] sm:$0xff]
      %v961 = vld [vmem:[%s954 + $0x30] sm:$0xff]
      %v962 = vld [vmem:[%s954 + $0x38] sm:$0xff]
      %v963 = vld [vmem:[%s5] sm:$0x1]
      %v965 = vlaneseq
      %v966 = vshrl.u32 %v965, 7
      %v967 = vsub.s32 0, %v966
      %v968 = vrot.slane %v963, %v967
      %970 = vmatprep.subr.mxu0 0.0
      %971 = vmatpush1.msra.mxu0 0.0
      %972 = vmatprep.subr.mxu0 0.0
      %973 = vmatpush1.msra.mxu0 0.0
      %974 = vmatprep.subr.mxu0 0.0
      %975 = vmatpush1.msra.mxu0 0.0
      %976 = vmatprep.subr.mxu0 0.0
      %977 = vmatpush1.msra.mxu0 0.0
      %978 = vmatprep.subr.mxu0 0.0
      %979 = vmatpush1.msra.mxu0 0.0
      %980 = vmatprep.subr.mxu0 0.0
      %981 = vmatpush1.msra.mxu0 0.0
      %982 = vmatprep.subr.mxu0 0.0
      %983 = vmatpush1.msra.mxu0 0.0
      %984 = vmatprep.subr.mxu0 0.0
      %985 = vmatpush1.msra.mxu0 0.0
      %986 = vmatprep.subr.mxu0 0.0
      %987 = vmatpush1.msra.mxu0 %v962
      %988 = vmatprep.subr.mxu0 0.0
      %989 = vmatpush1.msra.mxu0 %v961
      %990 = vmatprep.subr.mxu0 0.0
      %991 = vmatpush1.msra.mxu0 %v960
      %992 = vmatprep.subr.mxu0 0.0
      %993 = vmatpush1.msra.mxu0 %v959
      %994 = vmatprep.subr.mxu0 0.0
      %995 = vmatpush1.msra.mxu0 %v958
      %996 = vmatprep.subr.mxu0 0.0
      %997 = vmatpush1.msra.mxu0 %v957
      %998 = vmatprep.subr.mxu0 0.0
      %999 = vmatpush1.msra.mxu0 %v956
      %1000 = vmatprep.subr.mxu0 0.0
      %1001 = vmatpush1.msra.mxu0 %v955
      %1002 = vmatprep.subr.mxu0 0.0
      %1003 = vmatpush2.msra.mxu0 0.0
      %1004 = vmatprep.subr.mxu0 0.0
      %1005 = vmatpush2.msra.mxu0 0.0
      %1006 = vmatprep.subr.mxu0 0.0
      %1007 = vmatpush2.msra.mxu0 0.0
      %1008 = vmatprep.subr.mxu0 0.0
      %1009 = vmatpush2.msra.mxu0 0.0
      %1010 = vmatprep.subr.mxu0 0.0
      %1011 = vmatpush2.msra.mxu0 0.0
      %1012 = vmatprep.subr.mxu0 0.0
      %1013 = vmatpush2.msra.mxu0 0.0
      %1014 = vmatprep.subr.mxu0 0.0
      %1015 = vmatpush2.msra.mxu0 0.0
      %1016 = vmatprep.subr.mxu0 0.0
      %1017 = vmatpush2.msra.mxu0 0.0
      %1018 = vmatprep.subr.mxu0 0.0
      %1019 = vmatpush2.msra.mxu0 0.0
      %1020 = vmatprep.subr.mxu0 0.0
      %1021 = vmatpush2.msra.mxu0 0.0
      %1022 = vmatprep.subr.mxu0 0.0
      %1023 = vmatpush2.msra.mxu0 0.0
      %1024 = vmatprep.subr.mxu0 0.0
      %1025 = vmatpush2.msra.mxu0 0.0
      %1026 = vmatprep.subr.mxu0 0.0
      %1027 = vmatpush2.msra.mxu0 0.0
      %1028 = vmatprep.subr.mxu0 0.0
      %1029 = vmatpush2.msra.mxu0 0.0
      %1030 = vmatprep.subr.mxu0 0.0
      %1031 = vmatpush2.msra.mxu0 0.0
      %1032 = vmatprep.subr.mxu0 0.0
      %1033 = vmatpush2.msra.mxu0 0.0
      %1034 = vmatprep.mubr.f32.mxu0 0.0
      %1035 = vmatmul.mubr.f32.gmra.mxu0 %v502
      %v1036 = vpop.f32.mrf.mxu0
      %v1037 = vadd.f32 %v968, %v1036
      %v1038 = vpop.f32.mrf.mxu0
      %1039 = vmatprep.mubr.f32.mxu0 0.0
      %1040 = vmatmul.mubr.f32.gmra.mxu0 %v505
      %v1041 = vpop.f32.mrf.mxu0
      %v1042 = vadd.f32 %v968, %v1041
      %v1043 = vpop.f32.mrf.mxu0
      %1044 = vmatprep.mubr.f32.mxu0 0.0
      %1045 = vmatmul.mubr.f32.gmra.mxu0 %v508
      %v1046 = vpop.f32.mrf.mxu0
      %v1047 = vadd.f32 %v968, %v1046
      %v1048 = vpop.f32.mrf.mxu0
      %1049 = vmatprep.mubr.f32.mxu0 0.0
      %1050 = vmatmul.mubr.f32.gmra.mxu0 %v511
      %v1051 = vpop.f32.mrf.mxu0
      %v1052 = vadd.f32 %v968, %v1051
      %v1053 = vpop.f32.mrf.mxu0
      %1054 = vmatprep.mubr.f32.mxu0 0.0
      %1055 = vmatmul.mubr.f32.gmra.mxu0 %v514
      %v1056 = vpop.f32.mrf.mxu0
      %v1057 = vadd.f32 %v968, %v1056
      %v1058 = vpop.f32.mrf.mxu0
      %1059 = vmatprep.mubr.f32.mxu0 0.0
      %1060 = vmatmul.mubr.f32.gmra.mxu0 %v517
      %v1061 = vpop.f32.mrf.mxu0
      %v1062 = vadd.f32 %v968, %v1061
      %v1063 = vpop.f32.mrf.mxu0
      %1064 = vmatprep.mubr.f32.mxu0 0.0
      %1065 = vmatmul.mubr.f32.gmra.mxu0 %v520
      %v1066 = vpop.f32.mrf.mxu0
      %v1067 = vadd.f32 %v968, %v1066
      %v1068 = vpop.f32.mrf.mxu0
      %1069 = vmatprep.mubr.f32.mxu0 0.0
      %1070 = vmatmul.mubr.f32.gmra.mxu0 %v523
      %v1071 = vpop.f32.mrf.mxu0
      %v1072 = vadd.f32 %v968, %v1071
      %v1073 = vpop.f32.mrf.mxu0
      %1074 = vdwg.mxu0
      %v1075 = vadd.f32 %v916, %v1037
      %v1076 = vadd.f32 %v921, %v1042
      %v1077 = vadd.f32 %v926, %v1047
      %v1078 = vadd.f32 %v931, %v1052
      %v1079 = vadd.f32 %v936, %v1057
      %v1080 = vadd.f32 %v941, %v1062
      %v1081 = vadd.f32 %v946, %v1067
      %v1082 = vadd.f32 %v951, %v1072
      %v1083 = vmax.f32 %v1075, 0.0
      %v1084 = vmax.f32 %v1076, 0.0
      %v1085 = vmax.f32 %v1077, 0.0
      %v1086 = vmax.f32 %v1078, 0.0
      %v1087 = vmax.f32 %v1079, 0.0
      %v1088 = vmax.f32 %v1080, 0.0
      %v1089 = vmax.f32 %v1081, 0.0
      %v1090 = vmax.f32 %v1082, 0.0
      %v1091 = vld [vmem:[%s6] sm:$0x1]
      %v1093 = vlaneseq
      %v1094 = vshrl.u32 %v1093, 7
      %v1095 = vsub.s32 0, %v1094
      %v1096 = vrot.slane %v1091, %v1095
      %v1098 = vmul.f32 %v1083, %v1096
      %v1099 = vmul.f32 %v1084, %v1096
      %v1100 = vmul.f32 %v1085, %v1096
      %v1101 = vmul.f32 %v1086, %v1096
      %v1102 = vmul.f32 %v1087, %v1096
      %v1103 = vmul.f32 %v1088, %v1096
      %v1104 = vmul.f32 %v1089, %v1096
      %v1105 = vmul.f32 %v1090, %v1096
      %v1106 = vsel %vm661, %v1098, 0.0
      %1107 = vadd.xlane.f32.xlu0 %v1106
      %v1108 = vpop.xlane.xlu0 %1107
      %v1109 = vsel %vm661, %v1099, 0.0
      %1110 = vadd.xlane.f32.xlu0 %v1109
      %v1111 = vpop.xlane.xlu0 %1110
      %v1112 = vsel %vm661, %v1100, 0.0
      %1113 = vadd.xlane.f32.xlu0 %v1112
      %v1114 = vpop.xlane.xlu0 %1113
      %v1115 = vsel %vm661, %v1101, 0.0
      %1116 = vadd.xlane.f32.xlu0 %v1115
      %v1117 = vpop.xlane.xlu0 %1116
      %v1118 = vsel %vm661, %v1102, 0.0
      %1119 = vadd.xlane.f32.xlu0 %v1118
      %v1120 = vpop.xlane.xlu0 %1119
      %v1121 = vsel %vm661, %v1103, 0.0
      %1122 = vadd.xlane.f32.xlu0 %v1121
      %v1123 = vpop.xlane.xlu0 %1122
      %v1124 = vsel %vm661, %v1104, 0.0
      %1125 = vadd.xlane.f32.xlu0 %v1124
      %v1126 = vpop.xlane.xlu0 %1125
      %v1127 = vsel %vm661, %v1105, 0.0
      %1128 = vadd.xlane.f32.xlu0 %v1127
      %v1129 = vpop.xlane.xlu0 %1128
      %v1130 = vld [vmem:[#allocation2] sm:$0x1]
      %v1132 = vlaneseq
      %v1133 = vshrl.u32 %v1132, 7
      %v1134 = vsub.s32 0, %v1133
      %v1135 = vrot.slane %v1130, %v1134
      %v1137 = vadd.f32 %v1108, %v1135
      %v1138 = vadd.f32 %v1111, %v1135
      %v1139 = vadd.f32 %v1114, %v1135
      %v1140 = vadd.f32 %v1117, %v1135
      %v1141 = vadd.f32 %v1120, %v1135
      %v1142 = vadd.f32 %v1123, %v1135
      %v1143 = vadd.f32 %v1126, %v1135
      %v1144 = vadd.f32 %v1129, %v1135
      %v1145 = vsub.f32 0.0, %v1137
      %v1146 = vsub.f32 0.0, %v1138
      %v1147 = vsub.f32 0.0, %v1139
      %v1148 = vsub.f32 0.0, %v1140
      %v1149 = vsub.f32 0.0, %v1141
      %v1150 = vsub.f32 0.0, %v1142
      %v1151 = vsub.f32 0.0, %v1143
      %v1152 = vsub.f32 0.0, %v1144
      %v1153 = vmul.f32 %v1145, 1.442695
      %v1154 = vpow.pop %v1153
      %v1155 = vmul.f32 %v1146, 1.442695
      %v1156 = vpow.pop %v1155
      %v1157 = vmul.f32 %v1147, 1.442695
      %v1158 = vpow.pop %v1157
      %v1159 = vmul.f32 %v1148, 1.442695
      %v1160 = vpow.pop %v1159
      %v1161 = vmul.f32 %v1149, 1.442695
      %v1162 = vpow.pop %v1161
      %v1163 = vmul.f32 %v1150, 1.442695
      %v1164 = vpow.pop %v1163
      %v1165 = vmul.f32 %v1151, 1.442695
      %v1166 = vpow.pop %v1165
      %v1167 = vmul.f32 %v1152, 1.442695
      %v1168 = vpow.pop %v1167
      %v1169 = vadd.f32 %v1154, 1.0
      %v1170 = vadd.f32 %v1156, 1.0
      %v1171 = vadd.f32 %v1158, 1.0
      %v1172 = vadd.f32 %v1160, 1.0
      %v1173 = vadd.f32 %v1162, 1.0
      %v1174 = vadd.f32 %v1164, 1.0
      %v1175 = vadd.f32 %v1166, 1.0
      %v1176 = vadd.f32 %v1168, 1.0
      %v1177 = vrcp.pop %v1169
      %v1178 = vmul.f32 1.0, %v1177
      %v1179 = vrcp.pop %v1170
      %v1180 = vmul.f32 1.0, %v1179
      %v1181 = vrcp.pop %v1171
      %v1182 = vmul.f32 1.0, %v1181
      %v1183 = vrcp.pop %v1172
      %v1184 = vmul.f32 1.0, %v1183
      %v1185 = vrcp.pop %v1173
      %v1186 = vmul.f32 1.0, %v1185
      %v1187 = vrcp.pop %v1174
      %v1188 = vmul.f32 1.0, %v1187
      %v1189 = vrcp.pop %v1175
      %v1190 = vmul.f32 1.0, %v1189
      %v1191 = vrcp.pop %v1176
      %v1192 = vmul.f32 1.0, %v1191
      %1194 = vset.pattern.permute.xlu0 0
      %1195 = vperm.xlu0 %1194, %v1178
      %v1196 = vpop.permute.xlu0 %1195
      %1199 = vset.pattern.permute.xlu0 0
      %1200 = vperm.xlu0 %1199, %v1180
      %v1201 = vpop.permute.xlu0 %1200
      %1204 = vset.pattern.permute.xlu0 0
      %1205 = vperm.xlu0 %1204, %v1182
      %v1206 = vpop.permute.xlu0 %1205
      %1209 = vset.pattern.permute.xlu0 0
      %1210 = vperm.xlu0 %1209, %v1184
      %v1211 = vpop.permute.xlu0 %1210
      %1214 = vset.pattern.permute.xlu0 0
      %1215 = vperm.xlu0 %1214, %v1186
      %v1216 = vpop.permute.xlu0 %1215
      %1219 = vset.pattern.permute.xlu0 0
      %1220 = vperm.xlu0 %1219, %v1188
      %v1221 = vpop.permute.xlu0 %1220
      %1224 = vset.pattern.permute.xlu0 0
      %1225 = vperm.xlu0 %1224, %v1190
      %v1226 = vpop.permute.xlu0 %1225
      %1229 = vset.pattern.permute.xlu0 0
      %1230 = vperm.xlu0 %1229, %v1192
      %v1231 = vpop.permute.xlu0 %1230
      %v1233 = vmul.f32 %v1196, %v806
      %v1234 = vmul.f32 %v1201, %v807
      %v1235 = vmul.f32 %v1206, %v808
      %v1236 = vmul.f32 %v1211, %v809
      %v1237 = vmul.f32 %v1216, %v810
      %v1238 = vmul.f32 %v1221, %v811
      %v1239 = vmul.f32 %v1226, %v812
      %v1240 = vmul.f32 %v1231, %v813
      %s1241 = scalar_lea.vmem %s327, 64
      %1242 = vst.msk [vmem:[%s1241] sm:$0xff] %vm355, %v1233
      %1243 = vst.msk [vmem:[%s1241 + $0x8] sm:$0xff] %vm355, %v1234
      %1244 = vst.msk [vmem:[%s1241 + $0x10] sm:$0xff] %vm355, %v1235
      %1245 = vst.msk [vmem:[%s1241 + $0x18] sm:$0xff] %vm355, %v1236
      %1246 = vst.msk [vmem:[%s1241 + $0x20] sm:$0xff] %vm355, %v1237
      %1247 = vst.msk [vmem:[%s1241 + $0x28] sm:$0xff] %vm355, %v1238
      %1248 = vst.msk [vmem:[%s1241 + $0x30] sm:$0xff] %vm355, %v1239
      %1249 = vst.msk [vmem:[%s1241 + $0x38] sm:$0xff] %vm355, %v1240
      %s1250 = scalar_lea.vmem %s317, 128
      %v1251 = vld [vmem:[%s1250] sm:$0xff]
      %v1252 = vld [vmem:[%s1250 + $0x8] sm:$0xff]
      %v1253 = vld [vmem:[%s1250 + $0x10] sm:$0xff]
      %v1254 = vld [vmem:[%s1250 + $0x18] sm:$0xff]
      %v1255 = vld [vmem:[%s1250 + $0x20] sm:$0xff]
      %v1256 = vld [vmem:[%s1250 + $0x28] sm:$0xff]
      %v1257 = vld [vmem:[%s1250 + $0x30] sm:$0xff]
      %v1258 = vld [vmem:[%s1250 + $0x38] sm:$0xff]
      %v1259 = vld [vmem:[%s2] sm:$0xff]
      %v1260 = vld [vmem:[%s2 + $0x8] sm:$0xff]
      %v1261 = vld [vmem:[%s2 + $0x10] sm:$0xff]
      %v1262 = vld [vmem:[%s2 + $0x18] sm:$0xff]
      %v1263 = vld [vmem:[%s3] sm:$0x1]
      %v1265 = vlaneseq
      %v1266 = vshrl.u32 %v1265, 7
      %v1267 = vsub.s32 0, %v1266
      %v1268 = vrot.slane %v1263, %v1267
      %v1271 = vsel %vm355, %v1251, 0
      %v1274 = vsel %vm355, %v1252, 0
      %v1277 = vsel %vm355, %v1253, 0
      %v1280 = vsel %vm355, %v1254, 0
      %v1283 = vsel %vm355, %v1255, 0
      %v1286 = vsel %vm355, %v1256, 0
      %v1289 = vsel %vm355, %v1257, 0
      %v1292 = vsel %vm355, %v1258, 0
      %1294 = vmatprep.subr.mxu0 0.0
      %1295 = vmatpush1.msra.mxu0 0.0
      %1296 = vmatprep.subr.mxu0 0.0
      %1297 = vmatpush1.msra.mxu0 0.0
      %1298 = vmatprep.subr.mxu0 0.0
      %1299 = vmatpush1.msra.mxu0 0.0
      %1300 = vmatprep.subr.mxu0 0.0
      %1301 = vmatpush1.msra.mxu0 0.0
      %1302 = vmatprep.subr.mxu0 0.0
      %1303 = vmatpush1.msra.mxu0 0.0
      %1304 = vmatprep.subr.mxu0 0.0
      %1305 = vmatpush1.msra.mxu0 0.0
      %1306 = vmatprep.subr.mxu0 0.0
      %1307 = vmatpush1.msra.mxu0 0.0
      %1308 = vmatprep.subr.mxu0 0.0
      %1309 = vmatpush1.msra.mxu0 0.0
      %1310 = vmatprep.subr.mxu0 0.0
      %1311 = vmatpush1.msra.mxu0 0.0
      %1312 = vmatprep.subr.mxu0 0.0
      %1313 = vmatpush1.msra.mxu0 0.0
      %1314 = vmatprep.subr.mxu0 0.0
      %1315 = vmatpush1.msra.mxu0 0.0
      %1316 = vmatprep.subr.mxu0 0.0
      %1317 = vmatpush1.msra.mxu0 0.0
      %1318 = vmatprep.subr.mxu0 0.0
      %1319 = vmatpush1.msra.mxu0 %v1262
      %1320 = vmatprep.subr.mxu0 0.0
      %1321 = vmatpush1.msra.mxu0 %v1261
      %1322 = vmatprep.subr.mxu0 0.0
      %1323 = vmatpush1.msra.mxu0 %v1260
      %1324 = vmatprep.subr.mxu0 0.0
      %1325 = vmatpush1.msra.mxu0 %v1259
      %1326 = vmatprep.subr.mxu0 0.0
      %1327 = vmatpush2.msra.mxu0 0.0
      %1328 = vmatprep.subr.mxu0 0.0
      %1329 = vmatpush2.msra.mxu0 0.0
      %1330 = vmatprep.subr.mxu0 0.0
      %1331 = vmatpush2.msra.mxu0 0.0
      %1332 = vmatprep.subr.mxu0 0.0
      %1333 = vmatpush2.msra.mxu0 0.0
      %1334 = vmatprep.subr.mxu0 0.0
      %1335 = vmatpush2.msra.mxu0 0.0
      %1336 = vmatprep.subr.mxu0 0.0
      %1337 = vmatpush2.msra.mxu0 0.0
      %1338 = vmatprep.subr.mxu0 0.0
      %1339 = vmatpush2.msra.mxu0 0.0
      %1340 = vmatprep.subr.mxu0 0.0
      %1341 = vmatpush2.msra.mxu0 0.0
      %1342 = vmatprep.subr.mxu0 0.0
      %1343 = vmatpush2.msra.mxu0 0.0
      %1344 = vmatprep.subr.mxu0 0.0
      %1345 = vmatpush2.msra.mxu0 0.0
      %1346 = vmatprep.subr.mxu0 0.0
      %1347 = vmatpush2.msra.mxu0 0.0
      %1348 = vmatprep.subr.mxu0 0.0
      %1349 = vmatpush2.msra.mxu0 0.0
      %1350 = vmatprep.subr.mxu0 0.0
      %1351 = vmatpush2.msra.mxu0 0.0
      %1352 = vmatprep.subr.mxu0 0.0
      %1353 = vmatpush2.msra.mxu0 0.0
      %1354 = vmatprep.subr.mxu0 0.0
      %1355 = vmatpush2.msra.mxu0 0.0
      %1356 = vmatprep.subr.mxu0 0.0
      %1357 = vmatpush2.msra.mxu0 0.0
      %1358 = vmatprep.mubr.f32.mxu0 0.0
      %1359 = vmatmul.mubr.f32.gmra.mxu0 %v1271
      %v1360 = vpop.f32.mrf.mxu0
      %v1361 = vadd.f32 %v1268, %v1360
      %v1362 = vpop.f32.mrf.mxu0
      %1363 = vmatprep.mubr.f32.mxu0 0.0
      %1364 = vmatmul.mubr.f32.gmra.mxu0 %v1274
      %v1365 = vpop.f32.mrf.mxu0
      %v1366 = vadd.f32 %v1268, %v1365
      %v1367 = vpop.f32.mrf.mxu0
      %1368 = vmatprep.mubr.f32.mxu0 0.0
      %1369 = vmatmul.mubr.f32.gmra.mxu0 %v1277
      %v1370 = vpop.f32.mrf.mxu0
      %v1371 = vadd.f32 %v1268, %v1370
      %v1372 = vpop.f32.mrf.mxu0
      %1373 = vmatprep.mubr.f32.mxu0 0.0
      %1374 = vmatmul.mubr.f32.gmra.mxu0 %v1280
      %v1375 = vpop.f32.mrf.mxu0
      %v1376 = vadd.f32 %v1268, %v1375
      %v1377 = vpop.f32.mrf.mxu0
      %1378 = vmatprep.mubr.f32.mxu0 0.0
      %1379 = vmatmul.mubr.f32.gmra.mxu0 %v1283
      %v1380 = vpop.f32.mrf.mxu0
      %v1381 = vadd.f32 %v1268, %v1380
      %v1382 = vpop.f32.mrf.mxu0
      %1383 = vmatprep.mubr.f32.mxu0 0.0
      %1384 = vmatmul.mubr.f32.gmra.mxu0 %v1286
      %v1385 = vpop.f32.mrf.mxu0
      %v1386 = vadd.f32 %v1268, %v1385
      %v1387 = vpop.f32.mrf.mxu0
      %1388 = vmatprep.mubr.f32.mxu0 0.0
      %1389 = vmatmul.mubr.f32.gmra.mxu0 %v1289
      %v1390 = vpop.f32.mrf.mxu0
      %v1391 = vadd.f32 %v1268, %v1390
      %v1392 = vpop.f32.mrf.mxu0
      %1393 = vmatprep.mubr.f32.mxu0 0.0
      %1394 = vmatmul.mubr.f32.gmra.mxu0 %v1292
      %v1395 = vpop.f32.mrf.mxu0
      %v1396 = vadd.f32 %v1268, %v1395
      %v1397 = vpop.f32.mrf.mxu0
      %1398 = vdwg.mxu0
      %s1399 = scalar_lea.vmem %s4, 128
      %v1400 = vld [vmem:[%s1399] sm:$0xff]
      %v1401 = vld [vmem:[%s1399 + $0x8] sm:$0xff]
      %v1402 = vld [vmem:[%s1399 + $0x10] sm:$0xff]
      %v1403 = vld [vmem:[%s1399 + $0x18] sm:$0xff]
      %v1404 = vld [vmem:[%s1399 + $0x20] sm:$0xff]
      %v1405 = vld [vmem:[%s1399 + $0x28] sm:$0xff]
      %v1406 = vld [vmem:[%s1399 + $0x30] sm:$0xff]
      %v1407 = vld [vmem:[%s1399 + $0x38] sm:$0xff]
      %v1408 = vld [vmem:[%s5] sm:$0x1]
      %v1410 = vlaneseq
      %v1411 = vshrl.u32 %v1410, 7
      %v1412 = vsub.s32 0, %v1411
      %v1413 = vrot.slane %v1408, %v1412
      %1415 = vmatprep.subr.mxu0 0.0
      %1416 = vmatpush1.msra.mxu0 0.0
      %1417 = vmatprep.subr.mxu0 0.0
      %1418 = vmatpush1.msra.mxu0 0.0
      %1419 = vmatprep.subr.mxu0 0.0
      %1420 = vmatpush1.msra.mxu0 0.0
      %1421 = vmatprep.subr.mxu0 0.0
      %1422 = vmatpush1.msra.mxu0 0.0
      %1423 = vmatprep.subr.mxu0 0.0
      %1424 = vmatpush1.msra.mxu0 0.0
      %1425 = vmatprep.subr.mxu0 0.0
      %1426 = vmatpush1.msra.mxu0 0.0
      %1427 = vmatprep.subr.mxu0 0.0
      %1428 = vmatpush1.msra.mxu0 0.0
      %1429 = vmatprep.subr.mxu0 0.0
      %1430 = vmatpush1.msra.mxu0 0.0
      %1431 = vmatprep.subr.mxu0 0.0
      %1432 = vmatpush1.msra.mxu0 %v1407
      %1433 = vmatprep.subr.mxu0 0.0
      %1434 = vmatpush1.msra.mxu0 %v1406
      %1435 = vmatprep.subr.mxu0 0.0
      %1436 = vmatpush1.msra.mxu0 %v1405
      %1437 = vmatprep.subr.mxu0 0.0
      %1438 = vmatpush1.msra.mxu0 %v1404
      %1439 = vmatprep.subr.mxu0 0.0
      %1440 = vmatpush1.msra.mxu0 %v1403
      %1441 = vmatprep.subr.mxu0 0.0
      %1442 = vmatpush1.msra.mxu0 %v1402
      %1443 = vmatprep.subr.mxu0 0.0
      %1444 = vmatpush1.msra.mxu0 %v1401
      %1445 = vmatprep.subr.mxu0 0.0
      %1446 = vmatpush1.msra.mxu0 %v1400
      %1447 = vmatprep.subr.mxu0 0.0
      %1448 = vmatpush2.msra.mxu0 0.0
      %1449 = vmatprep.subr.mxu0 0.0
      %1450 = vmatpush2.msra.mxu0 0.0
      %1451 = vmatprep.subr.mxu0 0.0
      %1452 = vmatpush2.msra.mxu0 0.0
      %1453 = vmatprep.subr.mxu0 0.0
      %1454 = vmatpush2.msra.mxu0 0.0
      %1455 = vmatprep.subr.mxu0 0.0
      %1456 = vmatpush2.msra.mxu0 0.0
      %1457 = vmatprep.subr.mxu0 0.0
      %1458 = vmatpush2.msra.mxu0 0.0
      %1459 = vmatprep.subr.mxu0 0.0
      %1460 = vmatpush2.msra.mxu0 0.0
      %1461 = vmatprep.subr.mxu0 0.0
      %1462 = vmatpush2.msra.mxu0 0.0
      %1463 = vmatprep.subr.mxu0 0.0
      %1464 = vmatpush2.msra.mxu0 0.0
      %1465 = vmatprep.subr.mxu0 0.0
      %1466 = vmatpush2.msra.mxu0 0.0
      %1467 = vmatprep.subr.mxu0 0.0
      %1468 = vmatpush2.msra.mxu0 0.0
      %1469 = vmatprep.subr.mxu0 0.0
      %1470 = vmatpush2.msra.mxu0 0.0
      %1471 = vmatprep.subr.mxu0 0.0
      %1472 = vmatpush2.msra.mxu0 0.0
      %1473 = vmatprep.subr.mxu0 0.0
      %1474 = vmatpush2.msra.mxu0 0.0
      %1475 = vmatprep.subr.mxu0 0.0
      %1476 = vmatpush2.msra.mxu0 0.0
      %1477 = vmatprep.subr.mxu0 0.0
      %1478 = vmatpush2.msra.mxu0 0.0
      %1479 = vmatprep.mubr.f32.mxu0 0.0
      %1480 = vmatmul.mubr.f32.gmra.mxu0 %v502
      %v1481 = vpop.f32.mrf.mxu0
      %v1482 = vadd.f32 %v1413, %v1481
      %v1483 = vpop.f32.mrf.mxu0
      %1484 = vmatprep.mubr.f32.mxu0 0.0
      %1485 = vmatmul.mubr.f32.gmra.mxu0 %v505
      %v1486 = vpop.f32.mrf.mxu0
      %v1487 = vadd.f32 %v1413, %v1486
      %v1488 = vpop.f32.mrf.mxu0
      %1489 = vmatprep.mubr.f32.mxu0 0.0
      %1490 = vmatmul.mubr.f32.gmra.mxu0 %v508
      %v1491 = vpop.f32.mrf.mxu0
      %v1492 = vadd.f32 %v1413, %v1491
      %v1493 = vpop.f32.mrf.mxu0
      %1494 = vmatprep.mubr.f32.mxu0 0.0
      %1495 = vmatmul.mubr.f32.gmra.mxu0 %v511
      %v1496 = vpop.f32.mrf.mxu0
      %v1497 = vadd.f32 %v1413, %v1496
      %v1498 = vpop.f32.mrf.mxu0
      %1499 = vmatprep.mubr.f32.mxu0 0.0
      %1500 = vmatmul.mubr.f32.gmra.mxu0 %v514
      %v1501 = vpop.f32.mrf.mxu0
      %v1502 = vadd.f32 %v1413, %v1501
      %v1503 = vpop.f32.mrf.mxu0
      %1504 = vmatprep.mubr.f32.mxu0 0.0
      %1505 = vmatmul.mubr.f32.gmra.mxu0 %v517
      %v1506 = vpop.f32.mrf.mxu0
      %v1507 = vadd.f32 %v1413, %v1506
      %v1508 = vpop.f32.mrf.mxu0
      %1509 = vmatprep.mubr.f32.mxu0 0.0
      %1510 = vmatmul.mubr.f32.gmra.mxu0 %v520
      %v1511 = vpop.f32.mrf.mxu0
      %v1512 = vadd.f32 %v1413, %v1511
      %v1513 = vpop.f32.mrf.mxu0
      %1514 = vmatprep.mubr.f32.mxu0 0.0
      %1515 = vmatmul.mubr.f32.gmra.mxu0 %v523
      %v1516 = vpop.f32.mrf.mxu0
      %v1517 = vadd.f32 %v1413, %v1516
      %v1518 = vpop.f32.mrf.mxu0
      %1519 = vdwg.mxu0
      %v1520 = vadd.f32 %v1361, %v1482
      %v1521 = vadd.f32 %v1366, %v1487
      %v1522 = vadd.f32 %v1371, %v1492
      %v1523 = vadd.f32 %v1376, %v1497
      %v1524 = vadd.f32 %v1381, %v1502
      %v1525 = vadd.f32 %v1386, %v1507
      %v1526 = vadd.f32 %v1391, %v1512
      %v1527 = vadd.f32 %v1396, %v1517
      %v1528 = vmax.f32 %v1520, 0.0
      %v1529 = vmax.f32 %v1521, 0.0
      %v1530 = vmax.f32 %v1522, 0.0
      %v1531 = vmax.f32 %v1523, 0.0
      %v1532 = vmax.f32 %v1524, 0.0
      %v1533 = vmax.f32 %v1525, 0.0
      %v1534 = vmax.f32 %v1526, 0.0
      %v1535 = vmax.f32 %v1527, 0.0
      %v1536 = vld [vmem:[%s6] sm:$0x1]
      %v1538 = vlaneseq
      %v1539 = vshrl.u32 %v1538, 7
      %v1540 = vsub.s32 0, %v1539
      %v1541 = vrot.slane %v1536, %v1540
      %v1543 = vmul.f32 %v1528, %v1541
      %v1544 = vmul.f32 %v1529, %v1541
      %v1545 = vmul.f32 %v1530, %v1541
      %v1546 = vmul.f32 %v1531, %v1541
      %v1547 = vmul.f32 %v1532, %v1541
      %v1548 = vmul.f32 %v1533, %v1541
      %v1549 = vmul.f32 %v1534, %v1541
      %v1550 = vmul.f32 %v1535, %v1541
      %v1551 = vsel %vm661, %v1543, 0.0
      %1552 = vadd.xlane.f32.xlu0 %v1551
      %v1553 = vpop.xlane.xlu0 %1552
      %v1554 = vsel %vm661, %v1544, 0.0
      %1555 = vadd.xlane.f32.xlu0 %v1554
      %v1556 = vpop.xlane.xlu0 %1555
      %v1557 = vsel %vm661, %v1545, 0.0
      %1558 = vadd.xlane.f32.xlu0 %v1557
      %v1559 = vpop.xlane.xlu0 %1558
      %v1560 = vsel %vm661, %v1546, 0.0
      %1561 = vadd.xlane.f32.xlu0 %v1560
      %v1562 = vpop.xlane.xlu0 %1561
      %v1563 = vsel %vm661, %v1547, 0.0
      %1564 = vadd.xlane.f32.xlu0 %v1563
      %v1565 = vpop.xlane.xlu0 %1564
      %v1566 = vsel %vm661, %v1548, 0.0
      %1567 = vadd.xlane.f32.xlu0 %v1566
      %v1568 = vpop.xlane.xlu0 %1567
      %v1569 = vsel %vm661, %v1549, 0.0
      %1570 = vadd.xlane.f32.xlu0 %v1569
      %v1571 = vpop.xlane.xlu0 %1570
      %v1572 = vsel %vm661, %v1550, 0.0
      %1573 = vadd.xlane.f32.xlu0 %v1572
      %v1574 = vpop.xlane.xlu0 %1573
      %v1575 = vld [vmem:[#allocation2] sm:$0x1]
      %v1577 = vlaneseq
      %v1578 = vshrl.u32 %v1577, 7
      %v1579 = vsub.s32 0, %v1578
      %v1580 = vrot.slane %v1575, %v1579
      %v1582 = vadd.f32 %v1553, %v1580
      %v1583 = vadd.f32 %v1556, %v1580
      %v1584 = vadd.f32 %v1559, %v1580
      %v1585 = vadd.f32 %v1562, %v1580
      %v1586 = vadd.f32 %v1565, %v1580
      %v1587 = vadd.f32 %v1568, %v1580
      %v1588 = vadd.f32 %v1571, %v1580
      %v1589 = vadd.f32 %v1574, %v1580
      %v1590 = vsub.f32 0.0, %v1582
      %v1591 = vsub.f32 0.0, %v1583
      %v1592 = vsub.f32 0.0, %v1584
      %v1593 = vsub.f32 0.0, %v1585
      %v1594 = vsub.f32 0.0, %v1586
      %v1595 = vsub.f32 0.0, %v1587
      %v1596 = vsub.f32 0.0, %v1588
      %v1597 = vsub.f32 0.0, %v1589
      %v1598 = vmul.f32 %v1590, 1.442695
      %v1599 = vpow.pop %v1598
      %v1600 = vmul.f32 %v1591, 1.442695
      %v1601 = vpow.pop %v1600
      %v1602 = vmul.f32 %v1592, 1.442695
      %v1603 = vpow.pop %v1602
      %v1604 = vmul.f32 %v1593, 1.442695
      %v1605 = vpow.pop %v1604
      %v1606 = vmul.f32 %v1594, 1.442695
      %v1607 = vpow.pop %v1606
      %v1608 = vmul.f32 %v1595, 1.442695
      %v1609 = vpow.pop %v1608
      %v1610 = vmul.f32 %v1596, 1.442695
      %v1611 = vpow.pop %v1610
      %v1612 = vmul.f32 %v1597, 1.442695
      %v1613 = vpow.pop %v1612
      %v1614 = vadd.f32 %v1599, 1.0
      %v1615 = vadd.f32 %v1601, 1.0
      %v1616 = vadd.f32 %v1603, 1.0
      %v1617 = vadd.f32 %v1605, 1.0
      %v1618 = vadd.f32 %v1607, 1.0
      %v1619 = vadd.f32 %v1609, 1.0
      %v1620 = vadd.f32 %v1611, 1.0
      %v1621 = vadd.f32 %v1613, 1.0
      %v1622 = vrcp.pop %v1614
      %v1623 = vmul.f32 1.0, %v1622
      %v1624 = vrcp.pop %v1615
      %v1625 = vmul.f32 1.0, %v1624
      %v1626 = vrcp.pop %v1616
      %v1627 = vmul.f32 1.0, %v1626
      %v1628 = vrcp.pop %v1617
      %v1629 = vmul.f32 1.0, %v1628
      %v1630 = vrcp.pop %v1618
      %v1631 = vmul.f32 1.0, %v1630
      %v1632 = vrcp.pop %v1619
      %v1633 = vmul.f32 1.0, %v1632
      %v1634 = vrcp.pop %v1620
      %v1635 = vmul.f32 1.0, %v1634
      %v1636 = vrcp.pop %v1621
      %v1637 = vmul.f32 1.0, %v1636
      %1639 = vset.pattern.permute.xlu0 0
      %1640 = vperm.xlu0 %1639, %v1623
      %v1641 = vpop.permute.xlu0 %1640
      %1644 = vset.pattern.permute.xlu0 0
      %1645 = vperm.xlu0 %1644, %v1625
      %v1646 = vpop.permute.xlu0 %1645
      %1649 = vset.pattern.permute.xlu0 0
      %1650 = vperm.xlu0 %1649, %v1627
      %v1651 = vpop.permute.xlu0 %1650
      %1654 = vset.pattern.permute.xlu0 0
      %1655 = vperm.xlu0 %1654, %v1629
      %v1656 = vpop.permute.xlu0 %1655
      %1659 = vset.pattern.permute.xlu0 0
      %1660 = vperm.xlu0 %1659, %v1631
      %v1661 = vpop.permute.xlu0 %1660
      %1664 = vset.pattern.permute.xlu0 0
      %1665 = vperm.xlu0 %1664, %v1633
      %v1666 = vpop.permute.xlu0 %1665
      %1669 = vset.pattern.permute.xlu0 0
      %1670 = vperm.xlu0 %1669, %v1635
      %v1671 = vpop.permute.xlu0 %1670
      %1674 = vset.pattern.permute.xlu0 0
      %1675 = vperm.xlu0 %1674, %v1637
      %v1676 = vpop.permute.xlu0 %1675
      %v1678 = vmul.f32 %v1641, %v1251
      %v1679 = vmul.f32 %v1646, %v1252
      %v1680 = vmul.f32 %v1651, %v1253
      %v1681 = vmul.f32 %v1656, %v1254
      %v1682 = vmul.f32 %v1661, %v1255
      %v1683 = vmul.f32 %v1666, %v1256
      %v1684 = vmul.f32 %v1671, %v1257
      %v1685 = vmul.f32 %v1676, %v1258
      %s1686 = scalar_lea.vmem %s327, 128
      %1687 = vst.msk [vmem:[%s1686] sm:$0xff] %vm355, %v1678
      %1688 = vst.msk [vmem:[%s1686 + $0x8] sm:$0xff] %vm355, %v1679
      %1689 = vst.msk [vmem:[%s1686 + $0x10] sm:$0xff] %vm355, %v1680
      %1690 = vst.msk [vmem:[%s1686 + $0x18] sm:$0xff] %vm355, %v1681
      %1691 = vst.msk [vmem:[%s1686 + $0x20] sm:$0xff] %vm355, %v1682
      %1692 = vst.msk [vmem:[%s1686 + $0x28] sm:$0xff] %vm355, %v1683
      %1693 = vst.msk [vmem:[%s1686 + $0x30] sm:$0xff] %vm355, %v1684
      %1694 = vst.msk [vmem:[%s1686 + $0x38] sm:$0xff] %vm355, %v1685
      %s1695 = scalar_lea.vmem %s317, 192
      %v1696 = vld [vmem:[%s1695] sm:$0xff]
      %v1697 = vld [vmem:[%s1695 + $0x8] sm:$0xff]
      %v1698 = vld [vmem:[%s1695 + $0x10] sm:$0xff]
      %v1699 = vld [vmem:[%s1695 + $0x18] sm:$0xff]
      %v1700 = vld [vmem:[%s1695 + $0x20] sm:$0xff]
      %v1701 = vld [vmem:[%s1695 + $0x28] sm:$0xff]
      %v1702 = vld [vmem:[%s1695 + $0x30] sm:$0xff]
      %v1703 = vld [vmem:[%s1695 + $0x38] sm:$0xff]
      %v1704 = vld [vmem:[%s2] sm:$0xff]
      %v1705 = vld [vmem:[%s2 + $0x8] sm:$0xff]
      %v1706 = vld [vmem:[%s2 + $0x10] sm:$0xff]
      %v1707 = vld [vmem:[%s2 + $0x18] sm:$0xff]
      %v1708 = vld [vmem:[%s3] sm:$0x1]
      %v1710 = vlaneseq
      %v1711 = vshrl.u32 %v1710, 7
      %v1712 = vsub.s32 0, %v1711
      %v1713 = vrot.slane %v1708, %v1712
      %v1716 = vsel %vm355, %v1696, 0
      %v1719 = vsel %vm355, %v1697, 0
      %v1722 = vsel %vm355, %v1698, 0
      %v1725 = vsel %vm355, %v1699, 0
      %v1728 = vsel %vm355, %v1700, 0
      %v1731 = vsel %vm355, %v1701, 0
      %v1734 = vsel %vm355, %v1702, 0
      %v1737 = vsel %vm355, %v1703, 0
      %1739 = vmatprep.subr.mxu0 0.0
      %1740 = vmatpush1.msra.mxu0 0.0
      %1741 = vmatprep.subr.mxu0 0.0
      %1742 = vmatpush1.msra.mxu0 0.0
      %1743 = vmatprep.subr.mxu0 0.0
      %1744 = vmatpush1.msra.mxu0 0.0
      %1745 = vmatprep.subr.mxu0 0.0
      %1746 = vmatpush1.msra.mxu0 0.0
      %1747 = vmatprep.subr.mxu0 0.0
      %1748 = vmatpush1.msra.mxu0 0.0
      %1749 = vmatprep.subr.mxu0 0.0
      %1750 = vmatpush1.msra.mxu0 0.0
      %1751 = vmatprep.subr.mxu0 0.0
      %1752 = vmatpush1.msra.mxu0 0.0
      %1753 = vmatprep.subr.mxu0 0.0
      %1754 = vmatpush1.msra.mxu0 0.0
      %1755 = vmatprep.subr.mxu0 0.0
      %1756 = vmatpush1.msra.mxu0 0.0
      %1757 = vmatprep.subr.mxu0 0.0
      %1758 = vmatpush1.msra.mxu0 0.0
      %1759 = vmatprep.subr.mxu0 0.0
      %1760 = vmatpush1.msra.mxu0 0.0
      %1761 = vmatprep.subr.mxu0 0.0
      %1762 = vmatpush1.msra.mxu0 0.0
      %1763 = vmatprep.subr.mxu0 0.0
      %1764 = vmatpush1.msra.mxu0 %v1707
      %1765 = vmatprep.subr.mxu0 0.0
      %1766 = vmatpush1.msra.mxu0 %v1706
      %1767 = vmatprep.subr.mxu0 0.0
      %1768 = vmatpush1.msra.mxu0 %v1705
      %1769 = vmatprep.subr.mxu0 0.0
      %1770 = vmatpush1.msra.mxu0 %v1704
      %1771 = vmatprep.subr.mxu0 0.0
      %1772 = vmatpush2.msra.mxu0 0.0
      %1773 = vmatprep.subr.mxu0 0.0
      %1774 = vmatpush2.msra.mxu0 0.0
      %1775 = vmatprep.subr.mxu0 0.0
      %1776 = vmatpush2.msra.mxu0 0.0
      %1777 = vmatprep.subr.mxu0 0.0
      %1778 = vmatpush2.msra.mxu0 0.0
      %1779 = vmatprep.subr.mxu0 0.0
      %1780 = vmatpush2.msra.mxu0 0.0
      %1781 = vmatprep.subr.mxu0 0.0
      %1782 = vmatpush2.msra.mxu0 0.0
      %1783 = vmatprep.subr.mxu0 0.0
      %1784 = vmatpush2.msra.mxu0 0.0
      %1785 = vmatprep.subr.mxu0 0.0
      %1786 = vmatpush2.msra.mxu0 0.0
      %1787 = vmatprep.subr.mxu0 0.0
      %1788 = vmatpush2.msra.mxu0 0.0
      %1789 = vmatprep.subr.mxu0 0.0
      %1790 = vmatpush2.msra.mxu0 0.0
      %1791 = vmatprep.subr.mxu0 0.0
      %1792 = vmatpush2.msra.mxu0 0.0
      %1793 = vmatprep.subr.mxu0 0.0
      %1794 = vmatpush2.msra.mxu0 0.0
      %1795 = vmatprep.subr.mxu0 0.0
      %1796 = vmatpush2.msra.mxu0 0.0
      %1797 = vmatprep.subr.mxu0 0.0
      %1798 = vmatpush2.msra.mxu0 0.0
      %1799 = vmatprep.subr.mxu0 0.0
      %1800 = vmatpush2.msra.mxu0 0.0
      %1801 = vmatprep.subr.mxu0 0.0
      %1802 = vmatpush2.msra.mxu0 0.0
      %1803 = vmatprep.mubr.f32.mxu0 0.0
      %1804 = vmatmul.mubr.f32.gmra.mxu0 %v1716
      %v1805 = vpop.f32.mrf.mxu0
      %v1806 = vadd.f32 %v1713, %v1805
      %v1807 = vpop.f32.mrf.mxu0
      %1808 = vmatprep.mubr.f32.mxu0 0.0
      %1809 = vmatmul.mubr.f32.gmra.mxu0 %v1719
      %v1810 = vpop.f32.mrf.mxu0
      %v1811 = vadd.f32 %v1713, %v1810
      %v1812 = vpop.f32.mrf.mxu0
      %1813 = vmatprep.mubr.f32.mxu0 0.0
      %1814 = vmatmul.mubr.f32.gmra.mxu0 %v1722
      %v1815 = vpop.f32.mrf.mxu0
      %v1816 = vadd.f32 %v1713, %v1815
      %v1817 = vpop.f32.mrf.mxu0
      %1818 = vmatprep.mubr.f32.mxu0 0.0
      %1819 = vmatmul.mubr.f32.gmra.mxu0 %v1725
      %v1820 = vpop.f32.mrf.mxu0
      %v1821 = vadd.f32 %v1713, %v1820
      %v1822 = vpop.f32.mrf.mxu0
      %1823 = vmatprep.mubr.f32.mxu0 0.0
      %1824 = vmatmul.mubr.f32.gmra.mxu0 %v1728
      %v1825 = vpop.f32.mrf.mxu0
      %v1826 = vadd.f32 %v1713, %v1825
      %v1827 = vpop.f32.mrf.mxu0
      %1828 = vmatprep.mubr.f32.mxu0 0.0
      %1829 = vmatmul.mubr.f32.gmra.mxu0 %v1731
      %v1830 = vpop.f32.mrf.mxu0
      %v1831 = vadd.f32 %v1713, %v1830
      %v1832 = vpop.f32.mrf.mxu0
      %1833 = vmatprep.mubr.f32.mxu0 0.0
      %1834 = vmatmul.mubr.f32.gmra.mxu0 %v1734
      %v1835 = vpop.f32.mrf.mxu0
      %v1836 = vadd.f32 %v1713, %v1835
      %v1837 = vpop.f32.mrf.mxu0
      %1838 = vmatprep.mubr.f32.mxu0 0.0
      %1839 = vmatmul.mubr.f32.gmra.mxu0 %v1737
      %v1840 = vpop.f32.mrf.mxu0
      %v1841 = vadd.f32 %v1713, %v1840
      %v1842 = vpop.f32.mrf.mxu0
      %1843 = vdwg.mxu0
      %s1844 = scalar_lea.vmem %s4, 192
      %v1845 = vld [vmem:[%s1844] sm:$0xff]
      %v1846 = vld [vmem:[%s1844 + $0x8] sm:$0xff]
      %v1847 = vld [vmem:[%s1844 + $0x10] sm:$0xff]
      %v1848 = vld [vmem:[%s1844 + $0x18] sm:$0xff]
      %v1849 = vld [vmem:[%s1844 + $0x20] sm:$0xff]
      %v1850 = vld [vmem:[%s1844 + $0x28] sm:$0xff]
      %v1851 = vld [vmem:[%s1844 + $0x30] sm:$0xff]
      %v1852 = vld [vmem:[%s1844 + $0x38] sm:$0xff]
      %v1853 = vld [vmem:[%s5] sm:$0x1]
      %v1855 = vlaneseq
      %v1856 = vshrl.u32 %v1855, 7
      %v1857 = vsub.s32 0, %v1856
      %v1858 = vrot.slane %v1853, %v1857
      %1860 = vmatprep.subr.mxu0 0.0
      %1861 = vmatpush1.msra.mxu0 0.0
      %1862 = vmatprep.subr.mxu0 0.0
      %1863 = vmatpush1.msra.mxu0 0.0
      %1864 = vmatprep.subr.mxu0 0.0
      %1865 = vmatpush1.msra.mxu0 0.0
      %1866 = vmatprep.subr.mxu0 0.0
      %1867 = vmatpush1.msra.mxu0 0.0
      %1868 = vmatprep.subr.mxu0 0.0
      %1869 = vmatpush1.msra.mxu0 0.0
      %1870 = vmatprep.subr.mxu0 0.0
      %1871 = vmatpush1.msra.mxu0 0.0
      %1872 = vmatprep.subr.mxu0 0.0
      %1873 = vmatpush1.msra.mxu0 0.0
      %1874 = vmatprep.subr.mxu0 0.0
      %1875 = vmatpush1.msra.mxu0 0.0
      %1876 = vmatprep.subr.mxu0 0.0
      %1877 = vmatpush1.msra.mxu0 %v1852
      %1878 = vmatprep.subr.mxu0 0.0
      %1879 = vmatpush1.msra.mxu0 %v1851
      %1880 = vmatprep.subr.mxu0 0.0
      %1881 = vmatpush1.msra.mxu0 %v1850
      %1882 = vmatprep.subr.mxu0 0.0
      %1883 = vmatpush1.msra.mxu0 %v1849
      %1884 = vmatprep.subr.mxu0 0.0
      %1885 = vmatpush1.msra.mxu0 %v1848
      %1886 = vmatprep.subr.mxu0 0.0
      %1887 = vmatpush1.msra.mxu0 %v1847
      %1888 = vmatprep.subr.mxu0 0.0
      %1889 = vmatpush1.msra.mxu0 %v1846
      %1890 = vmatprep.subr.mxu0 0.0
      %1891 = vmatpush1.msra.mxu0 %v1845
      %1892 = vmatprep.subr.mxu0 0.0
      %1893 = vmatpush2.msra.mxu0 0.0
      %1894 = vmatprep.subr.mxu0 0.0
      %1895 = vmatpush2.msra.mxu0 0.0
      %1896 = vmatprep.subr.mxu0 0.0
      %1897 = vmatpush2.msra.mxu0 0.0
      %1898 = vmatprep.subr.mxu0 0.0
      %1899 = vmatpush2.msra.mxu0 0.0
      %1900 = vmatprep.subr.mxu0 0.0
      %1901 = vmatpush2.msra.mxu0 0.0
      %1902 = vmatprep.subr.mxu0 0.0
      %1903 = vmatpush2.msra.mxu0 0.0
      %1904 = vmatprep.subr.mxu0 0.0
      %1905 = vmatpush2.msra.mxu0 0.0
      %1906 = vmatprep.subr.mxu0 0.0
      %1907 = vmatpush2.msra.mxu0 0.0
      %1908 = vmatprep.subr.mxu0 0.0
      %1909 = vmatpush2.msra.mxu0 0.0
      %1910 = vmatprep.subr.mxu0 0.0
      %1911 = vmatpush2.msra.mxu0 0.0
      %1912 = vmatprep.subr.mxu0 0.0
      %1913 = vmatpush2.msra.mxu0 0.0
      %1914 = vmatprep.subr.mxu0 0.0
      %1915 = vmatpush2.msra.mxu0 0.0
      %1916 = vmatprep.subr.mxu0 0.0
      %1917 = vmatpush2.msra.mxu0 0.0
      %1918 = vmatprep.subr.mxu0 0.0
      %1919 = vmatpush2.msra.mxu0 0.0
      %1920 = vmatprep.subr.mxu0 0.0
      %1921 = vmatpush2.msra.mxu0 0.0
      %1922 = vmatprep.subr.mxu0 0.0
      %1923 = vmatpush2.msra.mxu0 0.0
      %1924 = vmatprep.mubr.f32.mxu0 0.0
      %1925 = vmatmul.mubr.f32.gmra.mxu0 %v502
      %v1926 = vpop.f32.mrf.mxu0
      %v1927 = vadd.f32 %v1858, %v1926
      %v1928 = vpop.f32.mrf.mxu0
      %1929 = vmatprep.mubr.f32.mxu0 0.0
      %1930 = vmatmul.mubr.f32.gmra.mxu0 %v505
      %v1931 = vpop.f32.mrf.mxu0
      %v1932 = vadd.f32 %v1858, %v1931
      %v1933 = vpop.f32.mrf.mxu0
      %1934 = vmatprep.mubr.f32.mxu0 0.0
      %1935 = vmatmul.mubr.f32.gmra.mxu0 %v508
      %v1936 = vpop.f32.mrf.mxu0
      %v1937 = vadd.f32 %v1858, %v1936
      %v1938 = vpop.f32.mrf.mxu0
      %1939 = vmatprep.mubr.f32.mxu0 0.0
      %1940 = vmatmul.mubr.f32.gmra.mxu0 %v511
      %v1941 = vpop.f32.mrf.mxu0
      %v1942 = vadd.f32 %v1858, %v1941
      %v1943 = vpop.f32.mrf.mxu0
      %1944 = vmatprep.mubr.f32.mxu0 0.0
      %1945 = vmatmul.mubr.f32.gmra.mxu0 %v514
      %v1946 = vpop.f32.mrf.mxu0
      %v1947 = vadd.f32 %v1858, %v1946
      %v1948 = vpop.f32.mrf.mxu0
      %1949 = vmatprep.mubr.f32.mxu0 0.0
      %1950 = vmatmul.mubr.f32.gmra.mxu0 %v517
      %v1951 = vpop.f32.mrf.mxu0
      %v1952 = vadd.f32 %v1858, %v1951
      %v1953 = vpop.f32.mrf.mxu0
      %1954 = vmatprep.mubr.f32.mxu0 0.0
      %1955 = vmatmul.mubr.f32.gmra.mxu0 %v520
      %v1956 = vpop.f32.mrf.mxu0
      %v1957 = vadd.f32 %v1858, %v1956
      %v1958 = vpop.f32.mrf.mxu0
      %1959 = vmatprep.mubr.f32.mxu0 0.0
      %1960 = vmatmul.mubr.f32.gmra.mxu0 %v523
      %v1961 = vpop.f32.mrf.mxu0
      %v1962 = vadd.f32 %v1858, %v1961
      %v1963 = vpop.f32.mrf.mxu0
      %1964 = vdwg.mxu0
      %v1965 = vadd.f32 %v1806, %v1927
      %v1966 = vadd.f32 %v1811, %v1932
      %v1967 = vadd.f32 %v1816, %v1937
      %v1968 = vadd.f32 %v1821, %v1942
      %v1969 = vadd.f32 %v1826, %v1947
      %v1970 = vadd.f32 %v1831, %v1952
      %v1971 = vadd.f32 %v1836, %v1957
      %v1972 = vadd.f32 %v1841, %v1962
      %v1973 = vmax.f32 %v1965, 0.0
      %v1974 = vmax.f32 %v1966, 0.0
      %v1975 = vmax.f32 %v1967, 0.0
      %v1976 = vmax.f32 %v1968, 0.0
      %v1977 = vmax.f32 %v1969, 0.0
      %v1978 = vmax.f32 %v1970, 0.0
      %v1979 = vmax.f32 %v1971, 0.0
      %v1980 = vmax.f32 %v1972, 0.0
      %v1981 = vld [vmem:[%s6] sm:$0x1]
      %v1983 = vlaneseq
      %v1984 = vshrl.u32 %v1983, 7
      %v1985 = vsub.s32 0, %v1984
      %v1986 = vrot.slane %v1981, %v1985
      %v1988 = vmul.f32 %v1973, %v1986
      %v1989 = vmul.f32 %v1974, %v1986
      %v1990 = vmul.f32 %v1975, %v1986
      %v1991 = vmul.f32 %v1976, %v1986
      %v1992 = vmul.f32 %v1977, %v1986
      %v1993 = vmul.f32 %v1978, %v1986
      %v1994 = vmul.f32 %v1979, %v1986
      %v1995 = vmul.f32 %v1980, %v1986
      %v1996 = vsel %vm661, %v1988, 0.0
      %1997 = vadd.xlane.f32.xlu0 %v1996
      %v1998 = vpop.xlane.xlu0 %1997
      %v1999 = vsel %vm661, %v1989, 0.0
      %2000 = vadd.xlane.f32.xlu0 %v1999
      %v2001 = vpop.xlane.xlu0 %2000
      %v2002 = vsel %vm661, %v1990, 0.0
      %2003 = vadd.xlane.f32.xlu0 %v2002
      %v2004 = vpop.xlane.xlu0 %2003
      %v2005 = vsel %vm661, %v1991, 0.0
      %2006 = vadd.xlane.f32.xlu0 %v2005
      %v2007 = vpop.xlane.xlu0 %2006
      %v2008 = vsel %vm661, %v1992, 0.0
      %2009 = vadd.xlane.f32.xlu0 %v2008
      %v2010 = vpop.xlane.xlu0 %2009
      %v2011 = vsel %vm661, %v1993, 0.0
      %2012 = vadd.xlane.f32.xlu0 %v2011
      %v2013 = vpop.xlane.xlu0 %2012
      %v2014 = vsel %vm661, %v1994, 0.0
      %2015 = vadd.xlane.f32.xlu0 %v2014
      %v2016 = vpop.xlane.xlu0 %2015
      %v2017 = vsel %vm661, %v1995, 0.0
      %2018 = vadd.xlane.f32.xlu0 %v2017
      %v2019 = vpop.xlane.xlu0 %2018
      %v2020 = vld [vmem:[#allocation2] sm:$0x1]
      %v2022 = vlaneseq
      %v2023 = vshrl.u32 %v2022, 7
      %v2024 = vsub.s32 0, %v2023
      %v2025 = vrot.slane %v2020, %v2024
      %v2027 = vadd.f32 %v1998, %v2025
      %v2028 = vadd.f32 %v2001, %v2025
      %v2029 = vadd.f32 %v2004, %v2025
      %v2030 = vadd.f32 %v2007, %v2025
      %v2031 = vadd.f32 %v2010, %v2025
      %v2032 = vadd.f32 %v2013, %v2025
      %v2033 = vadd.f32 %v2016, %v2025
      %v2034 = vadd.f32 %v2019, %v2025
      %v2035 = vsub.f32 0.0, %v2027
      %v2036 = vsub.f32 0.0, %v2028
      %v2037 = vsub.f32 0.0, %v2029
      %v2038 = vsub.f32 0.0, %v2030
      %v2039 = vsub.f32 0.0, %v2031
      %v2040 = vsub.f32 0.0, %v2032
      %v2041 = vsub.f32 0.0, %v2033
      %v2042 = vsub.f32 0.0, %v2034
      %v2043 = vmul.f32 %v2035, 1.442695
      %v2044 = vpow.pop %v2043
      %v2045 = vmul.f32 %v2036, 1.442695
      %v2046 = vpow.pop %v2045
      %v2047 = vmul.f32 %v2037, 1.442695
      %v2048 = vpow.pop %v2047
      %v2049 = vmul.f32 %v2038, 1.442695
      %v2050 = vpow.pop %v2049
      %v2051 = vmul.f32 %v2039, 1.442695
      %v2052 = vpow.pop %v2051
      %v2053 = vmul.f32 %v2040, 1.442695
      %v2054 = vpow.pop %v2053
      %v2055 = vmul.f32 %v2041, 1.442695
      %v2056 = vpow.pop %v2055
      %v2057 = vmul.f32 %v2042, 1.442695
      %v2058 = vpow.pop %v2057
      %v2059 = vadd.f32 %v2044, 1.0
      %v2060 = vadd.f32 %v2046, 1.0
      %v2061 = vadd.f32 %v2048, 1.0
      %v2062 = vadd.f32 %v2050, 1.0
      %v2063 = vadd.f32 %v2052, 1.0
      %v2064 = vadd.f32 %v2054, 1.0
      %v2065 = vadd.f32 %v2056, 1.0
      %v2066 = vadd.f32 %v2058, 1.0
      %v2067 = vrcp.pop %v2059
      %v2068 = vmul.f32 1.0, %v2067
      %v2069 = vrcp.pop %v2060
      %v2070 = vmul.f32 1.0, %v2069
      %v2071 = vrcp.pop %v2061
      %v2072 = vmul.f32 1.0, %v2071
      %v2073 = vrcp.pop %v2062
      %v2074 = vmul.f32 1.0, %v2073
      %v2075 = vrcp.pop %v2063
      %v2076 = vmul.f32 1.0, %v2075
      %v2077 = vrcp.pop %v2064
      %v2078 = vmul.f32 1.0, %v2077
      %v2079 = vrcp.pop %v2065
      %v2080 = vmul.f32 1.0, %v2079
      %v2081 = vrcp.pop %v2066
      %v2082 = vmul.f32 1.0, %v2081
      %2084 = vset.pattern.permute.xlu0 0
      %2085 = vperm.xlu0 %2084, %v2068
      %v2086 = vpop.permute.xlu0 %2085
      %2089 = vset.pattern.permute.xlu0 0
      %2090 = vperm.xlu0 %2089, %v2070
      %v2091 = vpop.permute.xlu0 %2090
      %2094 = vset.pattern.permute.xlu0 0
      %2095 = vperm.xlu0 %2094, %v2072
      %v2096 = vpop.permute.xlu0 %2095
      %2099 = vset.pattern.permute.xlu0 0
      %2100 = vperm.xlu0 %2099, %v2074
      %v2101 = vpop.permute.xlu0 %2100
      %2104 = vset.pattern.permute.xlu0 0
      %2105 = vperm.xlu0 %2104, %v2076
      %v2106 = vpop.permute.xlu0 %2105
      %2109 = vset.pattern.permute.xlu0 0
      %2110 = vperm.xlu0 %2109, %v2078
      %v2111 = vpop.permute.xlu0 %2110
      %2114 = vset.pattern.permute.xlu0 0
      %2115 = vperm.xlu0 %2114, %v2080
      %v2116 = vpop.permute.xlu0 %2115
      %2119 = vset.pattern.permute.xlu0 0
      %2120 = vperm.xlu0 %2119, %v2082
      %v2121 = vpop.permute.xlu0 %2120
      %v2123 = vmul.f32 %v2086, %v1696
      %v2124 = vmul.f32 %v2091, %v1697
      %v2125 = vmul.f32 %v2096, %v1698
      %v2126 = vmul.f32 %v2101, %v1699
      %v2127 = vmul.f32 %v2106, %v1700
      %v2128 = vmul.f32 %v2111, %v1701
      %v2129 = vmul.f32 %v2116, %v1702
      %v2130 = vmul.f32 %v2121, %v1703
      %s2131 = scalar_lea.vmem %s327, 192
      %2132 = vst.msk [vmem:[%s2131] sm:$0xff] %vm355, %v2123
      %2133 = vst.msk [vmem:[%s2131 + $0x8] sm:$0xff] %vm355, %v2124
      %2134 = vst.msk [vmem:[%s2131 + $0x10] sm:$0xff] %vm355, %v2125
      %2135 = vst.msk [vmem:[%s2131 + $0x18] sm:$0xff] %vm355, %v2126
      %2136 = vst.msk [vmem:[%s2131 + $0x20] sm:$0xff] %vm355, %v2127
      %2137 = vst.msk [vmem:[%s2131 + $0x28] sm:$0xff] %vm355, %v2128
      %2138 = vst.msk [vmem:[%s2131 + $0x30] sm:$0xff] %vm355, %v2129
      %2139 = vst.msk [vmem:[%s2131 + $0x38] sm:$0xff] %vm355, %v2130
      %p2140 = scmp.lt.s32.totalorder %s21, 1
      %s2141 = scalar_select %p2140, %s21, 1
      %s2142 = smul.addr %s2141, 32
      %s2143 = smul.addr %s2142, 8
      %s2144 = scalar_lea.vmem %s8, %s2143
      // Predicated region
      $region53: #{attention_block_forward.1} parent=51 // pred_check
        %p2145 = pneg %p217
      $region54: #{attention_block_forward.1} parent=51 // pred_check_branch
        %2147 = sbr.rel (%p2145) target = $region56
      $region55: #{attention_block_forward.1} parent=51 // pred_region
        _
      $region56: #{attention_block_forward.1} parent=51 // pred_fallthru
        _
    $region52: #{attention_block_forward.1} parent=5 // pred_fallthru
      _
    %p2148 = scmp.le.s32.totalorder 2, %s16
    // Predicated region
    $region57: #{attention_block_forward.1} parent=5 // pred_check
      %p2149 = pneg %p2148
    $region58: #{attention_block_forward.1} parent=5 // pred_check_branch
      %2151 = sbr.rel (%p2149) target = $region60
    $region59: #{attention_block_forward.1} parent=5 // pred_region
      %s2152 = ssub.s32 %s16, 2
      // Predicated region
      $region61: #{attention_block_forward.1} parent=59 // pred_check
        %p2153 = pneg %p223
      $region62: #{attention_block_forward.1} parent=59 // pred_check_branch
        %2155 = sbr.rel (%p2153) target = $region64
      $region63: #{attention_block_forward.1} parent=59 // pred_region
        %p2156 = scmp.lt.s32.totalorder %s22, 1
        %s2157 = scalar_select %p2156, %s22, 1
        %s2158 = smul.addr %s2157, 32
        %s2159 = smul.addr %s2158, 8
        %s2160 = scalar_lea.vmem %s8, %s2159
      $region64: #{attention_block_forward.1} parent=59 // pred_fallthru
        _
    $region60: #{attention_block_forward.1} parent=5 // pred_fallthru
      _
  $region6: #{attention_block_forward.1} parent=0 // loop_footer
    %s20 = sadd.s32 1, %s16
  $region7: #{attention_block_forward.1} parent=0 // loop_footer_branch
    %15 = sbr.rel target = $region3
  $region8: #{attention_block_forward.1} parent=0 // loop_exit
    _

</llo_original>
